<compile_context>
chip_gen: v6e
topology: v6e:2x2x1
jax: 0.10.0
libtpu: 0.0.40
codegen_flags: <defaults>
</compile_context>

<pallas_src>
import jax
import jax.numpy as jnp
from jax import lax
from jax.experimental import pallas as pl
from jax.experimental.pallas import tpu as pltpu

# ---------------- model dimensions (small synthetic shapes) ----------------
B = 2      # batch
T = 8      # max sequence length
D = 32     # input feature dim
HP = 32    # pre_recurrence hidden
HR = 32    # recurrence hidden
HS = 16    # shortcut hidden
C = 8      # number of classes

# Packed-weight column offsets (single (D, 128) f32 buffer -> one DMA descriptor).
_C_WIN = 0                  # [wp | ws]                 cols [0, 48)
_C_WXH = HP + HS            # wxh                       cols [48, 80)
_C_WHH = _C_WXH + HR        # whh                       cols [80, 112)
_C_WPR = _C_WHH + HR        # wpost rows [:HR]          cols [112, 120)
_C_WPS = _C_WPR + C         # wpost rows [HR:] (padded) cols [120, 128)

# Packed-bias lane offsets (single (1, 88) f32 buffer).
_B_IN = 0                   # [bp | bs]
_B_H = HP + HS              # bh
_B_POST = _B_H + HR         # bpost


# ------------------------------- kernel ------------------------------------
def _kernel(x_ref,      # VMEM (B, T, D) f32   raw batch-major input (no wrapper relayout)
            len_ref,    # VMEM (B, 1) int32    sequence lengths
            w_ref,      # VMEM (D, 128) f32    packed [wp|ws|wxh|whh|wpost_r|wpost_s(pad)]
            b_ref,      # VMEM (1, 88) f32     packed [bp|bs|bh|bpost]
            o_ref):     # VMEM (B, C, T) f32   final layout, written directly
    # (B, T, D) -> (B*T, D); row = b*T + t (batch-major). Last dim untouched,
    # so this reshape is a pure layout no-op.
    x = x_ref[...].reshape(B * T, D)

    W = w_ref[...]
    bias = b_ref[...]
    w_in    = W[:, _C_WIN:_C_WIN + HP + HS]                    # (D, HP+HS)
    wxh     = W[:, _C_WXH:_C_WXH + HR]                         # (HP, HR)
    whh_bf  = W[:, _C_WHH:_C_WHH + HR].astype(jnp.bfloat16)    # (HR, HR) bf16 MXU operand
    wpost_r = W[:, _C_WPR:_C_WPR + C]                          # (HR, C)
    wpost_s = W[:HS, _C_WPS:_C_WPS + C]                        # (HS, C)
    b_in    = bias[:, _B_IN:_B_IN + HP + HS]                   # (1, HP+HS)
    b_h     = bias[:, _B_H:_B_H + HR]                          # (1, HR)
    b_post  = bias[:, _B_POST:_B_POST + C]                     # (1, C)

    # Fused prologue: one matmul for pre_recurrence + shortcut projections.
    proj = jnp.dot(x, w_in, preferred_element_type=jnp.float32) + b_in      # (B*T, HP+HS)
    pre = jnp.maximum(proj[:, :HP], 0.0)                                    # (B*T, HP) ReLU
    shortcut = proj[:, HP:]                                                 # (B*T, HS)

    # Hoisted out of the serial loop: RNN input projection and the h-independent
    # half of the head classifier (shortcut @ wpost[HR:] + bpost).
    xh = jnp.dot(pre, wxh, preferred_element_type=jnp.float32) + b_h        # (B*T, HR)
    sc_logits = (jnp.dot(shortcut, wpost_s, preferred_element_type=jnp.float32)
                 + b_post)                                                  # (B*T, C)

    # Hoisted length mask: a single compare; indexed (not recomputed) per step.
    lens = len_ref[...]                                                     # (B, 1) int32
    mask_bt = lens > lax.broadcasted_iota(jnp.int32, (B, T), 1)             # (B, T) bool

    def rows_at_t(m, t):
        # Pick the B batch-major rows {b*T + t}: static slices + one sublane concat.
        return jnp.concatenate(
            [m[b * T + t:b * T + t + 1, :] for b in range(B)], axis=0)

    # Length-masked Elman RNN, batched (B, HR) carry, statically unrolled over T.
    # Only h -> h@Whh -> tanh is serial; the per-step head matmul and the output
    # assembly below sit off that critical path and hide under the next step.
    h = jnp.zeros((B, HR), jnp.float32)
    rnn_logits = []
    for t in range(T):                                                      # static unroll
        xh_t = rows_at_t(xh, t)                                             # (B, HR)
        h_new = jnp.tanh(
            xh_t + jnp.dot(h.astype(jnp.bfloat16), whh_bf,
                           preferred_element_type=jnp.float32))             # f32 tanh/accum
        valid = jnp.broadcast_to(mask_bt[:, t:t + 1], (B, HR))              # one bcast, reused
        out_t = jnp.where(valid, h_new, 0.0)                                # zero padded outputs
        h = jnp.where(valid, h_new, h)                                      # freeze state past len
        rnn_logits.append(
            jnp.dot(out_t, wpost_r, preferred_element_type=jnp.float32))    # (B, C) head piece

    # Assemble the (B, C, T) output entirely in registers (no VMEM scratch, no
    # wrapper transpose): per batch, stack its T rows, add the hoisted shortcut
    # logits, transpose (T, C) -> (C, T), stack over the leading batch dim.
    per_batch = []
    for b in range(B):
        rnn_b = jnp.concatenate(
            [rnn_logits[t][b:b + 1, :] for t in range(T)], axis=0)          # (T, C)
        logits_b = rnn_b + sc_logits[b * T:(b + 1) * T, :]                  # (T, C)
        per_batch.append(jnp.transpose(logits_b)[None])                     # (1, C, T)
    o_ref[...] = jnp.concatenate(per_batch, axis=0).astype(o_ref.dtype)     # (B, C, T)


# ------------------------------ wrapper -------------------------------------
def pack_params(params):
    """One-time (outside jit) packing of the 9 weight/bias tensors into 2 buffers."""
    ws, bs, wp, bp, wxh, whh, bh, wpost, bpost = params
    wpost_s_pad = jnp.pad(wpost[HR:, :], ((0, HR - HS), (0, 0)))            # (HR, C), zero pad
    w_packed = jnp.concatenate(
        [wp, ws, wxh, whh, wpost[:HR, :], wpost_s_pad], axis=1)             # (D, 128)
    b_packed = jnp.concatenate([bp, bs, bh, bpost], axis=1)                 # (1, 88)
    return w_packed, b_packed


@jax.jit
def sub_word_classifier_forward(x, seq_lens_2d, w_packed, b_packed):
    """x: (B, T, D) f32, seq_lens_2d: (B, 1) int32. Returns (B, C, T) f32.

    The jitted graph is exactly one pallas_call: input/output layout handling,
    weight packing and the lens reshape all live outside (one-time / caller
    side), so there are no extra XLA dispatches or HBM round trips per call.
    """
    vmem = lambda: pl.BlockSpec(memory_space=pltpu.MemorySpace.VMEM)
    return pl.pallas_call(
        _kernel,
        out_shape=jax.ShapeDtypeStruct((B, C, T), jnp.float32),
        in_specs=[vmem(), vmem(), vmem(), vmem()],
        out_specs=vmem(),
    )(x, seq_lens_2d, w_packed, b_packed)


# ------------------------- pure-JAX reference --------------------------------
def reference_forward(x, seq_lens, params):
    ws, bs, wp, bp, wxh, whh, bh, wpost, bpost = params
    shortcut = x @ ws + bs                                 # (B, T, HS)
    pre = jnp.maximum(x @ wp + bp, 0.0)                    # (B, T, HP)

    def rnn_one(xb, Lb):
        def step(h, inp):
            xt, t = inp
            h_new = jnp.tanh(xt @ wxh + h @ whh + bh[0])
            valid = t < Lb
            return jnp.where(valid, h_new, h), jnp.where(valid, h_new, 0.0)
        _, outs = lax.scan(step, jnp.zeros((HR,), jnp.float32),
                           (xb, jnp.arange(T)))
        return outs

    rnn_out = jax.vmap(rnn_one)(pre, seq_lens)             # (B, T, HR)
    z = jnp.concatenate([rnn_out, shortcut], axis=2)       # (B, T, HR+HS)
    logits = z @ wpost + bpost                             # (B, T, C)
    return jnp.transpose(logits, (0, 2, 1))                # (B, C, T)


# ------------------------------- main ----------------------------------------
if __name__ == "__main__":
    key = jax.random.PRNGKey(0)
    keys = jax.random.split(key, 10)

    def init(k, shape, scale=0.1):
        return (scale * jax.random.normal(k, shape)).astype(jnp.float32)

    params = (
        init(keys[0], (D, HS)),        init(keys[1], (1, HS)),      # shortcut
        init(keys[2], (D, HP)),        init(keys[3], (1, HP)),      # pre
        init(keys[4], (HP, HR)),       init(keys[5], (HR, HR)),
        init(keys[6], (1, HR)),                                     # rnn
        init(keys[7], (HR + HS, C)),   init(keys[8], (1, C)),       # post
    )

    x = jax.random.normal(keys[9], (B, T, D), dtype=jnp.float32)
    seq_lens = jnp.array([T, T - 3], dtype=jnp.int32)   # padded sequences

    # One-time prep outside the jitted forward (no per-call XLA ops).
    w_packed, b_packed = pack_params(params)
    lens2d = seq_lens.reshape(B, 1).astype(jnp.int32)

    out = sub_word_classifier_forward(x, lens2d, w_packed, b_packed)
    out = jax.block_until_ready(out)

    ref = reference_forward(x, seq_lens, params)
    assert out.shape == (B, C, T), out.shape
    # Tolerance relaxed from 1e-5 because the recurrence operands (h, Whh) run
    # through the MXU in bf16 (f32 accumulation); expected max error is a few e-3.
    assert jnp.allclose(out, ref, atol=1e-2, rtol=1e-2), \
        float(jnp.max(jnp.abs(out - ref)))

    print("KERNEL_OK")
</pallas_src>

<mosaic_0001>
module attributes {stable_mosaic.version = 11 : i64} {
  func.func @_kernel(%arg0: memref<2x8x32xf32, #tpu.memory_space<vmem>>, %arg1: memref<2x1xi32, #tpu.memory_space<vmem>>, %arg2: memref<32x128xf32, #tpu.memory_space<vmem>>, %arg3: memref<1x88xf32, #tpu.memory_space<vmem>>, %arg4: memref<2x8x8xf32, #tpu.memory_space<vmem>>) attributes {dimension_semantics = [], scalar_prefetch = 0 : i64, scratch_operands = 0 : i64, tpu.core_type = #tpu.core_type<tc>} {
    %c0 = arith.constant 0 : index
    %c0_0 = arith.constant 0 : index
    %c0_1 = arith.constant 0 : index
    %0 = vector.load %arg0[%c0, %c0_0, %c0_1] : memref<2x8x32xf32, #tpu.memory_space<vmem>>, vector<2x8x32xf32>
    %1 = vector.shape_cast %0 : vector<2x8x32xf32> to vector<16x32xf32>
    %c0_2 = arith.constant 0 : index
    %c0_3 = arith.constant 0 : index
    %2 = vector.load %arg2[%c0_2, %c0_3] : memref<32x128xf32, #tpu.memory_space<vmem>>, vector<32x128xf32>
    %c0_4 = arith.constant 0 : index
    %c0_5 = arith.constant 0 : index
    %3 = vector.load %arg3[%c0_4, %c0_5] : memref<1x88xf32, #tpu.memory_space<vmem>>, vector<1x88xf32>
    %4 = vector.extract_strided_slice %2 {offsets = [0, 0], sizes = [32, 48], strides = [1, 1]} : vector<32x128xf32> to vector<32x48xf32>
    %5 = vector.extract_strided_slice %2 {offsets = [0, 48], sizes = [32, 32], strides = [1, 1]} : vector<32x128xf32> to vector<32x32xf32>
    %6 = vector.extract_strided_slice %2 {offsets = [0, 80], sizes = [32, 32], strides = [1, 1]} : vector<32x128xf32> to vector<32x32xf32>
    %7 = arith.truncf %6 : vector<32x32xf32> to vector<32x32xbf16>
    %8 = vector.extract_strided_slice %2 {offsets = [0, 112], sizes = [32, 8], strides = [1, 1]} : vector<32x128xf32> to vector<32x8xf32>
    %9 = vector.extract_strided_slice %2 {offsets = [0, 120], sizes = [16, 8], strides = [1, 1]} : vector<32x128xf32> to vector<16x8xf32>
    %10 = vector.extract_strided_slice %3 {offsets = [0, 0], sizes = [1, 48], strides = [1, 1]} : vector<1x88xf32> to vector<1x48xf32>
    %11 = vector.extract_strided_slice %3 {offsets = [0, 48], sizes = [1, 32], strides = [1, 1]} : vector<1x88xf32> to vector<1x32xf32>
    %12 = vector.extract_strided_slice %3 {offsets = [0, 80], sizes = [1, 8], strides = [1, 1]} : vector<1x88xf32> to vector<1x8xf32>
    %cst = arith.constant dense<0.000000e+00> : vector<16x48xf32>
    %13 = tpu.matmul %1, %4, %cst {dimension_numbers = #tpu.dot_dimension_numbers<[1], [0], [0], [1], [0, 0, 1, 1], [], []>} : vector<16x32xf32>, vector<32x48xf32>, vector<16x48xf32> -> vector<16x48xf32>
    %14 = vector.broadcast %10 : vector<1x48xf32> to vector<16x48xf32>
    %15 = arith.addf %13, %14 : vector<16x48xf32>
    %16 = vector.extract_strided_slice %15 {offsets = [0, 0], sizes = [16, 32], strides = [1, 1]} : vector<16x48xf32> to vector<16x32xf32>
    %cst_6 = arith.constant 0.000000e+00 : f32
    %17 = vector.broadcast %cst_6 : f32 to vector<16x32xf32>
    %18 = arith.maximumf %16, %17 : vector<16x32xf32>
    %19 = vector.extract_strided_slice %15 {offsets = [0, 32], sizes = [16, 16], strides = [1, 1]} : vector<16x48xf32> to vector<16x16xf32>
    %cst_7 = arith.constant dense<0.000000e+00> : vector<16x32xf32>
    %20 = tpu.matmul %18, %5, %cst_7 {dimension_numbers = #tpu.dot_dimension_numbers<[1], [0], [0], [1], [0, 0, 1, 1], [], []>} : vector<16x32xf32>, vector<32x32xf32>, vector<16x32xf32> -> vector<16x32xf32>
    %21 = vector.broadcast %11 : vector<1x32xf32> to vector<16x32xf32>
    %22 = arith.addf %20, %21 : vector<16x32xf32>
    %cst_8 = arith.constant dense<0.000000e+00> : vector<16x8xf32>
    %23 = tpu.matmul %19, %9, %cst_8 {dimension_numbers = #tpu.dot_dimension_numbers<[1], [0], [0], [1], [0, 0, 1, 1], [], []>} : vector<16x16xf32>, vector<16x8xf32>, vector<16x8xf32> -> vector<16x8xf32>
    %24 = vector.broadcast %12 : vector<1x8xf32> to vector<16x8xf32>
    %25 = arith.addf %23, %24 : vector<16x8xf32>
    %c0_9 = arith.constant 0 : index
    %c0_10 = arith.constant 0 : index
    %26 = vector.load %arg1[%c0_9, %c0_10] : memref<2x1xi32, #tpu.memory_space<vmem>>, vector<2x1xi32>
    %27 = tpu.iota {dimensions = array<i32: 1>} : vector<2x8xi32>
    %28 = vector.broadcast %26 : vector<2x1xi32> to vector<2x8xi32>
    %29 = arith.cmpi sgt, %28, %27 : vector<2x8xi32>
    %cst_11 = arith.constant 0.000000e+00 : f32
    %30 = vector.broadcast %cst_11 : f32 to vector<2x32xf32>
    %31 = vector.extract_strided_slice %22 {offsets = [0, 0], sizes = [1, 32], strides = [1, 1]} : vector<16x32xf32> to vector<1x32xf32>
    %32 = vector.extract_strided_slice %22 {offsets = [8, 0], sizes = [1, 32], strides = [1, 1]} : vector<16x32xf32> to vector<1x32xf32>
    %33 = tpu.concatenate %31, %32 in 0 : vector<1x32xf32>, vector<1x32xf32> -> vector<2x32xf32>
    %34 = arith.truncf %30 : vector<2x32xf32> to vector<2x32xbf16>
    %cst_12 = arith.constant dense<0.000000e+00> : vector<2x32xf32>
    %35 = tpu.matmul %34, %7, %cst_12 {dimension_numbers = #tpu.dot_dimension_numbers<[1], [0], [0], [1], [0, 0, 1, 1], [], []>} : vector<2x32xbf16>, vector<32x32xbf16>, vector<2x32xf32> -> vector<2x32xf32>
    %36 = arith.addf %33, %35 : vector<2x32xf32>
    %37 = math.tanh %36 : vector<2x32xf32>
    %38 = vector.extract_strided_slice %29 {offsets = [0, 0], sizes = [2, 1], strides = [1, 1]} : vector<2x8xi1> to vector<2x1xi1>
    %39 = vector.shape_cast %38 : vector<2x1xi1> to vector<2x1xi1>
    %40 = vector.broadcast %39 : vector<2x1xi1> to vector<2x32xi1>
    %cst_13 = arith.constant 0.000000e+00 : f32
    %41 = vector.broadcast %cst_13 : f32 to vector<2x32xf32>
    %42 = arith.select %40, %37, %41 : vector<2x32xi1>, vector<2x32xf32>
    %43 = arith.select %40, %37, %30 : vector<2x32xi1>, vector<2x32xf32>
    %cst_14 = arith.constant dense<0.000000e+00> : vector<2x8xf32>
    %44 = tpu.matmul %42, %8, %cst_14 {dimension_numbers = #tpu.dot_dimension_numbers<[1], [0], [0], [1], [0, 0, 1, 1], [], []>} : vector<2x32xf32>, vector<32x8xf32>, vector<2x8xf32> -> vector<2x8xf32>
    %45 = vector.extract_strided_slice %22 {offsets = [1, 0], sizes = [1, 32], strides = [1, 1]} : vector<16x32xf32> to vector<1x32xf32>
    %46 = vector.extract_strided_slice %22 {offsets = [9, 0], sizes = [1, 32], strides = [1, 1]} : vector<16x32xf32> to vector<1x32xf32>
    %47 = tpu.concatenate %45, %46 in 0 : vector<1x32xf32>, vector<1x32xf32> -> vector<2x32xf32>
    %48 = arith.truncf %43 : vector<2x32xf32> to vector<2x32xbf16>
    %cst_15 = arith.constant dense<0.000000e+00> : vector<2x32xf32>
    %49 = tpu.matmul %48, %7, %cst_15 {dimension_numbers = #tpu.dot_dimension_numbers<[1], [0], [0], [1], [0, 0, 1, 1], [], []>} : vector<2x32xbf16>, vector<32x32xbf16>, vector<2x32xf32> -> vector<2x32xf32>
    %50 = arith.addf %47, %49 : vector<2x32xf32>
    %51 = math.tanh %50 : vector<2x32xf32>
    %52 = vector.extract_strided_slice %29 {offsets = [0, 1], sizes = [2, 1], strides = [1, 1]} : vector<2x8xi1> to vector<2x1xi1>
    %53 = vector.shape_cast %52 : vector<2x1xi1> to vector<2x1xi1>
    %54 = vector.broadcast %53 : vector<2x1xi1> to vector<2x32xi1>
    %cst_16 = arith.constant 0.000000e+00 : f32
    %55 = vector.broadcast %cst_16 : f32 to vector<2x32xf32>
    %56 = arith.select %54, %51, %55 : vector<2x32xi1>, vector<2x32xf32>
    %57 = arith.select %54, %51, %43 : vector<2x32xi1>, vector<2x32xf32>
    %cst_17 = arith.constant dense<0.000000e+00> : vector<2x8xf32>
    %58 = tpu.matmul %56, %8, %cst_17 {dimension_numbers = #tpu.dot_dimension_numbers<[1], [0], [0], [1], [0, 0, 1, 1], [], []>} : vector<2x32xf32>, vector<32x8xf32>, vector<2x8xf32> -> vector<2x8xf32>
    %59 = vector.extract_strided_slice %22 {offsets = [2, 0], sizes = [1, 32], strides = [1, 1]} : vector<16x32xf32> to vector<1x32xf32>
    %60 = vector.extract_strided_slice %22 {offsets = [10, 0], sizes = [1, 32], strides = [1, 1]} : vector<16x32xf32> to vector<1x32xf32>
    %61 = tpu.concatenate %59, %60 in 0 : vector<1x32xf32>, vector<1x32xf32> -> vector<2x32xf32>
    %62 = arith.truncf %57 : vector<2x32xf32> to vector<2x32xbf16>
    %cst_18 = arith.constant dense<0.000000e+00> : vector<2x32xf32>
    %63 = tpu.matmul %62, %7, %cst_18 {dimension_numbers = #tpu.dot_dimension_numbers<[1], [0], [0], [1], [0, 0, 1, 1], [], []>} : vector<2x32xbf16>, vector<32x32xbf16>, vector<2x32xf32> -> vector<2x32xf32>
    %64 = arith.addf %61, %63 : vector<2x32xf32>
    %65 = math.tanh %64 : vector<2x32xf32>
    %66 = vector.extract_strided_slice %29 {offsets = [0, 2], sizes = [2, 1], strides = [1, 1]} : vector<2x8xi1> to vector<2x1xi1>
    %67 = vector.shape_cast %66 : vector<2x1xi1> to vector<2x1xi1>
    %68 = vector.broadcast %67 : vector<2x1xi1> to vector<2x32xi1>
    %cst_19 = arith.constant 0.000000e+00 : f32
    %69 = vector.broadcast %cst_19 : f32 to vector<2x32xf32>
    %70 = arith.select %68, %65, %69 : vector<2x32xi1>, vector<2x32xf32>
    %71 = arith.select %68, %65, %57 : vector<2x32xi1>, vector<2x32xf32>
    %cst_20 = arith.constant dense<0.000000e+00> : vector<2x8xf32>
    %72 = tpu.matmul %70, %8, %cst_20 {dimension_numbers = #tpu.dot_dimension_numbers<[1], [0], [0], [1], [0, 0, 1, 1], [], []>} : vector<2x32xf32>, vector<32x8xf32>, vector<2x8xf32> -> vector<2x8xf32>
    %73 = vector.extract_strided_slice %22 {offsets = [3, 0], sizes = [1, 32], strides = [1, 1]} : vector<16x32xf32> to vector<1x32xf32>
    %74 = vector.extract_strided_slice %22 {offsets = [11, 0], sizes = [1, 32], strides = [1, 1]} : vector<16x32xf32> to vector<1x32xf32>
    %75 = tpu.concatenate %73, %74 in 0 : vector<1x32xf32>, vector<1x32xf32> -> vector<2x32xf32>
    %76 = arith.truncf %71 : vector<2x32xf32> to vector<2x32xbf16>
    %cst_21 = arith.constant dense<0.000000e+00> : vector<2x32xf32>
    %77 = tpu.matmul %76, %7, %cst_21 {dimension_numbers = #tpu.dot_dimension_numbers<[1], [0], [0], [1], [0, 0, 1, 1], [], []>} : vector<2x32xbf16>, vector<32x32xbf16>, vector<2x32xf32> -> vector<2x32xf32>
    %78 = arith.addf %75, %77 : vector<2x32xf32>
    %79 = math.tanh %78 : vector<2x32xf32>
    %80 = vector.extract_strided_slice %29 {offsets = [0, 3], sizes = [2, 1], strides = [1, 1]} : vector<2x8xi1> to vector<2x1xi1>
    %81 = vector.shape_cast %80 : vector<2x1xi1> to vector<2x1xi1>
    %82 = vector.broadcast %81 : vector<2x1xi1> to vector<2x32xi1>
    %cst_22 = arith.constant 0.000000e+00 : f32
    %83 = vector.broadcast %cst_22 : f32 to vector<2x32xf32>
    %84 = arith.select %82, %79, %83 : vector<2x32xi1>, vector<2x32xf32>
    %85 = arith.select %82, %79, %71 : vector<2x32xi1>, vector<2x32xf32>
    %cst_23 = arith.constant dense<0.000000e+00> : vector<2x8xf32>
    %86 = tpu.matmul %84, %8, %cst_23 {dimension_numbers = #tpu.dot_dimension_numbers<[1], [0], [0], [1], [0, 0, 1, 1], [], []>} : vector<2x32xf32>, vector<32x8xf32>, vector<2x8xf32> -> vector<2x8xf32>
    %87 = vector.extract_strided_slice %22 {offsets = [4, 0], sizes = [1, 32], strides = [1, 1]} : vector<16x32xf32> to vector<1x32xf32>
    %88 = vector.extract_strided_slice %22 {offsets = [12, 0], sizes = [1, 32], strides = [1, 1]} : vector<16x32xf32> to vector<1x32xf32>
    %89 = tpu.concatenate %87, %88 in 0 : vector<1x32xf32>, vector<1x32xf32> -> vector<2x32xf32>
    %90 = arith.truncf %85 : vector<2x32xf32> to vector<2x32xbf16>
    %cst_24 = arith.constant dense<0.000000e+00> : vector<2x32xf32>
    %91 = tpu.matmul %90, %7, %cst_24 {dimension_numbers = #tpu.dot_dimension_numbers<[1], [0], [0], [1], [0, 0, 1, 1], [], []>} : vector<2x32xbf16>, vector<32x32xbf16>, vector<2x32xf32> -> vector<2x32xf32>
    %92 = arith.addf %89, %91 : vector<2x32xf32>
    %93 = math.tanh %92 : vector<2x32xf32>
    %94 = vector.extract_strided_slice %29 {offsets = [0, 4], sizes = [2, 1], strides = [1, 1]} : vector<2x8xi1> to vector<2x1xi1>
    %95 = vector.shape_cast %94 : vector<2x1xi1> to vector<2x1xi1>
    %96 = vector.broadcast %95 : vector<2x1xi1> to vector<2x32xi1>
    %cst_25 = arith.constant 0.000000e+00 : f32
    %97 = vector.broadcast %cst_25 : f32 to vector<2x32xf32>
    %98 = arith.select %96, %93, %97 : vector<2x32xi1>, vector<2x32xf32>
    %99 = arith.select %96, %93, %85 : vector<2x32xi1>, vector<2x32xf32>
    %cst_26 = arith.constant dense<0.000000e+00> : vector<2x8xf32>
    %100 = tpu.matmul %98, %8, %cst_26 {dimension_numbers = #tpu.dot_dimension_numbers<[1], [0], [0], [1], [0, 0, 1, 1], [], []>} : vector<2x32xf32>, vector<32x8xf32>, vector<2x8xf32> -> vector<2x8xf32>
    %101 = vector.extract_strided_slice %22 {offsets = [5, 0], sizes = [1, 32], strides = [1, 1]} : vector<16x32xf32> to vector<1x32xf32>
    %102 = vector.extract_strided_slice %22 {offsets = [13, 0], sizes = [1, 32], strides = [1, 1]} : vector<16x32xf32> to vector<1x32xf32>
    %103 = tpu.concatenate %101, %102 in 0 : vector<1x32xf32>, vector<1x32xf32> -> vector<2x32xf32>
    %104 = arith.truncf %99 : vector<2x32xf32> to vector<2x32xbf16>
    %cst_27 = arith.constant dense<0.000000e+00> : vector<2x32xf32>
    %105 = tpu.matmul %104, %7, %cst_27 {dimension_numbers = #tpu.dot_dimension_numbers<[1], [0], [0], [1], [0, 0, 1, 1], [], []>} : vector<2x32xbf16>, vector<32x32xbf16>, vector<2x32xf32> -> vector<2x32xf32>
    %106 = arith.addf %103, %105 : vector<2x32xf32>
    %107 = math.tanh %106 : vector<2x32xf32>
    %108 = vector.extract_strided_slice %29 {offsets = [0, 5], sizes = [2, 1], strides = [1, 1]} : vector<2x8xi1> to vector<2x1xi1>
    %109 = vector.shape_cast %108 : vector<2x1xi1> to vector<2x1xi1>
    %110 = vector.broadcast %109 : vector<2x1xi1> to vector<2x32xi1>
    %cst_28 = arith.constant 0.000000e+00 : f32
    %111 = vector.broadcast %cst_28 : f32 to vector<2x32xf32>
    %112 = arith.select %110, %107, %111 : vector<2x32xi1>, vector<2x32xf32>
    %113 = arith.select %110, %107, %99 : vector<2x32xi1>, vector<2x32xf32>
    %cst_29 = arith.constant dense<0.000000e+00> : vector<2x8xf32>
    %114 = tpu.matmul %112, %8, %cst_29 {dimension_numbers = #tpu.dot_dimension_numbers<[1], [0], [0], [1], [0, 0, 1, 1], [], []>} : vector<2x32xf32>, vector<32x8xf32>, vector<2x8xf32> -> vector<2x8xf32>
    %115 = vector.extract_strided_slice %22 {offsets = [6, 0], sizes = [1, 32], strides = [1, 1]} : vector<16x32xf32> to vector<1x32xf32>
    %116 = vector.extract_strided_slice %22 {offsets = [14, 0], sizes = [1, 32], strides = [1, 1]} : vector<16x32xf32> to vector<1x32xf32>
    %117 = tpu.concatenate %115, %116 in 0 : vector<1x32xf32>, vector<1x32xf32> -> vector<2x32xf32>
    %118 = arith.truncf %113 : vector<2x32xf32> to vector<2x32xbf16>
    %cst_30 = arith.constant dense<0.000000e+00> : vector<2x32xf32>
    %119 = tpu.matmul %118, %7, %cst_30 {dimension_numbers = #tpu.dot_dimension_numbers<[1], [0], [0], [1], [0, 0, 1, 1], [], []>} : vector<2x32xbf16>, vector<32x32xbf16>, vector<2x32xf32> -> vector<2x32xf32>
    %120 = arith.addf %117, %119 : vector<2x32xf32>
    %121 = math.tanh %120 : vector<2x32xf32>
    %122 = vector.extract_strided_slice %29 {offsets = [0, 6], sizes = [2, 1], strides = [1, 1]} : vector<2x8xi1> to vector<2x1xi1>
    %123 = vector.shape_cast %122 : vector<2x1xi1> to vector<2x1xi1>
    %124 = vector.broadcast %123 : vector<2x1xi1> to vector<2x32xi1>
    %cst_31 = arith.constant 0.000000e+00 : f32
    %125 = vector.broadcast %cst_31 : f32 to vector<2x32xf32>
    %126 = arith.select %124, %121, %125 : vector<2x32xi1>, vector<2x32xf32>
    %127 = arith.select %124, %121, %113 : vector<2x32xi1>, vector<2x32xf32>
    %cst_32 = arith.constant dense<0.000000e+00> : vector<2x8xf32>
    %128 = tpu.matmul %126, %8, %cst_32 {dimension_numbers = #tpu.dot_dimension_numbers<[1], [0], [0], [1], [0, 0, 1, 1], [], []>} : vector<2x32xf32>, vector<32x8xf32>, vector<2x8xf32> -> vector<2x8xf32>
    %129 = vector.extract_strided_slice %22 {offsets = [7, 0], sizes = [1, 32], strides = [1, 1]} : vector<16x32xf32> to vector<1x32xf32>
    %130 = vector.extract_strided_slice %22 {offsets = [15, 0], sizes = [1, 32], strides = [1, 1]} : vector<16x32xf32> to vector<1x32xf32>
    %131 = tpu.concatenate %129, %130 in 0 : vector<1x32xf32>, vector<1x32xf32> -> vector<2x32xf32>
    %132 = arith.truncf %127 : vector<2x32xf32> to vector<2x32xbf16>
    %cst_33 = arith.constant dense<0.000000e+00> : vector<2x32xf32>
    %133 = tpu.matmul %132, %7, %cst_33 {dimension_numbers = #tpu.dot_dimension_numbers<[1], [0], [0], [1], [0, 0, 1, 1], [], []>} : vector<2x32xbf16>, vector<32x32xbf16>, vector<2x32xf32> -> vector<2x32xf32>
    %134 = arith.addf %131, %133 : vector<2x32xf32>
    %135 = math.tanh %134 : vector<2x32xf32>
    %136 = vector.extract_strided_slice %29 {offsets = [0, 7], sizes = [2, 1], strides = [1, 1]} : vector<2x8xi1> to vector<2x1xi1>
    %137 = vector.shape_cast %136 : vector<2x1xi1> to vector<2x1xi1>
    %138 = vector.broadcast %137 : vector<2x1xi1> to vector<2x32xi1>
    %cst_34 = arith.constant 0.000000e+00 : f32
    %139 = vector.broadcast %cst_34 : f32 to vector<2x32xf32>
    %140 = arith.select %138, %135, %139 : vector<2x32xi1>, vector<2x32xf32>
    %cst_35 = arith.constant dense<0.000000e+00> : vector<2x8xf32>
    %141 = tpu.matmul %140, %8, %cst_35 {dimension_numbers = #tpu.dot_dimension_numbers<[1], [0], [0], [1], [0, 0, 1, 1], [], []>} : vector<2x32xf32>, vector<32x8xf32>, vector<2x8xf32> -> vector<2x8xf32>
    %142 = vector.extract_strided_slice %44 {offsets = [0, 0], sizes = [1, 8], strides = [1, 1]} : vector<2x8xf32> to vector<1x8xf32>
    %143 = vector.extract_strided_slice %58 {offsets = [0, 0], sizes = [1, 8], strides = [1, 1]} : vector<2x8xf32> to vector<1x8xf32>
    %144 = vector.extract_strided_slice %72 {offsets = [0, 0], sizes = [1, 8], strides = [1, 1]} : vector<2x8xf32> to vector<1x8xf32>
    %145 = vector.extract_strided_slice %86 {offsets = [0, 0], sizes = [1, 8], strides = [1, 1]} : vector<2x8xf32> to vector<1x8xf32>
    %146 = vector.extract_strided_slice %100 {offsets = [0, 0], sizes = [1, 8], strides = [1, 1]} : vector<2x8xf32> to vector<1x8xf32>
    %147 = vector.extract_strided_slice %114 {offsets = [0, 0], sizes = [1, 8], strides = [1, 1]} : vector<2x8xf32> to vector<1x8xf32>
    %148 = vector.extract_strided_slice %128 {offsets = [0, 0], sizes = [1, 8], strides = [1, 1]} : vector<2x8xf32> to vector<1x8xf32>
    %149 = vector.extract_strided_slice %141 {offsets = [0, 0], sizes = [1, 8], strides = [1, 1]} : vector<2x8xf32> to vector<1x8xf32>
    %150 = tpu.concatenate %142, %143, %144, %145, %146, %147, %148, %149 in 0 : vector<1x8xf32>, vector<1x8xf32>, vector<1x8xf32>, vector<1x8xf32>, vector<1x8xf32>, vector<1x8xf32>, vector<1x8xf32>, vector<1x8xf32> -> vector<8x8xf32>
    %151 = vector.extract_strided_slice %25 {offsets = [0, 0], sizes = [8, 8], strides = [1, 1]} : vector<16x8xf32> to vector<8x8xf32>
    %152 = arith.addf %150, %151 : vector<8x8xf32>
    %153 = tpu.transpose %152, [1, 0] : vector<8x8xf32> -> vector<8x8xf32>
    %154 = vector.shape_cast %153 : vector<8x8xf32> to vector<1x8x8xf32>
    %155 = vector.extract_strided_slice %44 {offsets = [1, 0], sizes = [1, 8], strides = [1, 1]} : vector<2x8xf32> to vector<1x8xf32>
    %156 = vector.extract_strided_slice %58 {offsets = [1, 0], sizes = [1, 8], strides = [1, 1]} : vector<2x8xf32> to vector<1x8xf32>
    %157 = vector.extract_strided_slice %72 {offsets = [1, 0], sizes = [1, 8], strides = [1, 1]} : vector<2x8xf32> to vector<1x8xf32>
    %158 = vector.extract_strided_slice %86 {offsets = [1, 0], sizes = [1, 8], strides = [1, 1]} : vector<2x8xf32> to vector<1x8xf32>
    %159 = vector.extract_strided_slice %100 {offsets = [1, 0], sizes = [1, 8], strides = [1, 1]} : vector<2x8xf32> to vector<1x8xf32>
    %160 = vector.extract_strided_slice %114 {offsets = [1, 0], sizes = [1, 8], strides = [1, 1]} : vector<2x8xf32> to vector<1x8xf32>
    %161 = vector.extract_strided_slice %128 {offsets = [1, 0], sizes = [1, 8], strides = [1, 1]} : vector<2x8xf32> to vector<1x8xf32>
    %162 = vector.extract_strided_slice %141 {offsets = [1, 0], sizes = [1, 8], strides = [1, 1]} : vector<2x8xf32> to vector<1x8xf32>
    %163 = tpu.concatenate %155, %156, %157, %158, %159, %160, %161, %162 in 0 : vector<1x8xf32>, vector<1x8xf32>, vector<1x8xf32>, vector<1x8xf32>, vector<1x8xf32>, vector<1x8xf32>, vector<1x8xf32>, vector<1x8xf32> -> vector<8x8xf32>
    %164 = vector.extract_strided_slice %25 {offsets = [8, 0], sizes = [8, 8], strides = [1, 1]} : vector<16x8xf32> to vector<8x8xf32>
    %165 = arith.addf %163, %164 : vector<8x8xf32>
    %166 = tpu.transpose %165, [1, 0] : vector<8x8xf32> -> vector<8x8xf32>
    %167 = vector.shape_cast %166 : vector<8x8xf32> to vector<1x8x8xf32>
    %168 = tpu.concatenate %154, %167 in 0 : vector<1x8x8xf32>, vector<1x8x8xf32> -> vector<2x8x8xf32>
    %c0_36 = arith.constant 0 : index
    %c0_37 = arith.constant 0 : index
    %c0_38 = arith.constant 0 : index
    %169 = vector.load %arg4[%c0_36, %c0_37, %c0_38] : memref<2x8x8xf32, #tpu.memory_space<vmem>>, vector<2x8x8xf32>
    tpu.vector_store %arg4[%c0_36, %c0_37, %c0_38], %168 {strides = array<i32>} : memref<2x8x8xf32, #tpu.memory_space<vmem>>, vector<2x8x8xf32>,
    return
  }
}

</mosaic_0001>

<llo_original>
// kernel: sub_word_classifier_forward.1
$region0: #{sub_word_classifier_forward.1}
  #allocation0 [shape = 'u32[]', space=smem, size = 0x4, offset = 0x4, fixed_abs, tag = 'smem constant byte address 0x4 - core index']
  #allocation1 [shape = 'u32[144,128]{1,0:T(1,128)}', space=vmem, size = 0x12000, scoped, tag = 'internal scratch']
  %s0 = inlined_call_operand.hbm [shape: f32[2,8,32], index: 0, kind: input, shape index: {}]
  %s1 = inlined_call_operand.vmem [shape: s32[2,1], index: 1, kind: input, shape index: {}]
  %s2 = inlined_call_operand.hbm [shape: f32[32,128], index: 2, kind: input, shape index: {}]
  %s3 = inlined_call_operand.vmem [shape: f32[1,88], index: 3, kind: input, shape index: {}]
  %s4 = inlined_call_operand.hbm [shape: f32[2,8,8], index: 4, kind: output, shape index: {}]
  %s5 = sld [smem:[#allocation0]]
  $region34: #{sub_word_classifier_forward.1} parent=0
    _
  %s7 = ssub.s32 1, %s5
  %s8 = scalar_select 0, %s7, %s5
  $region1: #{sub_word_classifier_forward.1} parent=0
    #allocation2 [shape = 'u8[8192]{0}', space=vmem, size = 0x2000, scoped, tag = 'input window, operand 0, single buffered']
    #allocation3 [shape = 's32[1]{0}', space=sflag, size = 0x4, scoped, tag = 'scoped memory for sub_word_classifier_forward.1']
    #allocation4 [shape = 's32[1]{0}', space=sflag, size = 0x4, scoped, tag = 'scoped memory for sub_word_classifier_forward.1']
    #allocation5 [shape = 'u8[16384]{0}', space=vmem, size = 0x4000, scoped, tag = 'input window, operand 2, single buffered']
    #allocation6 [shape = 's32[1]{0}', space=sflag, size = 0x4, scoped, tag = 'scoped memory for sub_word_classifier_forward.1']
    #allocation7 [shape = 'u8[8192]{0}', space=vmem, size = 0x2000, scoped, tag = 'output window, operand 0, single buffered']
    %9 = vsyncpa [#allocation3], 0
    %10 = vsyncpa [#allocation6], 0
    %11 = vsyncpa [#allocation4], 0
    // Predicated region
    $region2: #{sub_word_classifier_forward.1} parent=1 // pred_check
      _
    $region3: #{sub_word_classifier_forward.1} parent=1 // pred_check_branch
      %13 = sbr.rel (0) target = $region5
    $region4: #{sub_word_classifier_forward.1} parent=1 // pred_region
      %s15 = ssub.s32 256, 256
      %16 = vsyncadd [#allocation3], %s15
      %s17 = sshll.u32 [#allocation2], 4
      %s18 = int_to_ptr.vmem [resolvable:$true] %s17
      %23 = dma.hbm_to_vmem [thread:$0]  %s0, 256, %s18, [#allocation3], 128, 128, 8
    $region5: #{sub_word_classifier_forward.1} parent=1 // pred_fallthru
      _
    // Predicated region
    $region6: #{sub_word_classifier_forward.1} parent=1 // pred_check
      _
    $region7: #{sub_word_classifier_forward.1} parent=1 // pred_check_branch
      %25 = sbr.rel (0) target = $region9
    $region8: #{sub_word_classifier_forward.1} parent=1 // pred_region
      _
    $region9: #{sub_word_classifier_forward.1} parent=1 // pred_fallthru
      _
    // Predicated region
    $region10: #{sub_word_classifier_forward.1} parent=1 // pred_check
      _
    $region11: #{sub_word_classifier_forward.1} parent=1 // pred_check_branch
      %27 = sbr.rel (0) target = $region13
    $region12: #{sub_word_classifier_forward.1} parent=1 // pred_region
      %s29 = ssub.s32 512, 512
      %30 = vsyncadd [#allocation6], %s29
      %s31 = sshll.u32 [#allocation5], 4
      %s32 = int_to_ptr.vmem [resolvable:$true] %s31
      %37 = dma.hbm_to_vmem [thread:$0]  %s2, 512, %s32, [#allocation6], 128, 128, 8
    $region13: #{sub_word_classifier_forward.1} parent=1 // pred_fallthru
      _
    // Predicated region
    $region14: #{sub_word_classifier_forward.1} parent=1 // pred_check
      _
    $region15: #{sub_word_classifier_forward.1} parent=1 // pred_check_branch
      %39 = sbr.rel (0) target = $region17
    $region16: #{sub_word_classifier_forward.1} parent=1 // pred_region
      _
    $region17: #{sub_word_classifier_forward.1} parent=1 // pred_fallthru
      _
    // Predicated region
    $region18: #{sub_word_classifier_forward.1} parent=1 // pred_check
      _
    $region19: #{sub_word_classifier_forward.1} parent=1 // pred_check_branch
      %41 = sbr.rel (0) target = $region21
    $region20: #{sub_word_classifier_forward.1} parent=1 // pred_region
      %42 = dma.done [#allocation3], 256
    $region21: #{sub_word_classifier_forward.1} parent=1 // pred_fallthru
      _
    // Predicated region
    $region22: #{sub_word_classifier_forward.1} parent=1 // pred_check
      _
    $region23: #{sub_word_classifier_forward.1} parent=1 // pred_check_branch
      %44 = sbr.rel (0) target = $region25
    $region24: #{sub_word_classifier_forward.1} parent=1 // pred_region
      %45 = dma.done [#allocation6], 512
    $region25: #{sub_word_classifier_forward.1} parent=1 // pred_fallthru
      _
    %v47 = vld [vmem:[#allocation2] sm:$0xff]
    %v48 = vld [vmem:[#allocation2 + $0x8] sm:$0xff]
    %v49 = vld [vmem:[#allocation5] sm:$0xff]
    %v50 = vld [vmem:[#allocation5 + $0x8] sm:$0xff]
    %v51 = vld [vmem:[#allocation5 + $0x10] sm:$0xff]
    %v52 = vld [vmem:[#allocation5 + $0x18] sm:$0xff]
    %v53 = vld [vmem:[%s3] sm:$0x1]
    %v54 = vpack.c.bf16 %v50, %v49
    %v55 = vpack.c.bf16 %v52, %v51
    %v57 = vlaneseq
    %v58 = vshrl.u32 %v57, 7
    %v59 = vsub.s32 0, %v58
    %v60 = vrot.slane %v53, %v59
    %vm62 = vcmask 261120
    %v64 = vsel %vm62, %v47, 0
    %v67 = vsel %vm62, %v48, 0
    %69 = vmatprep.subr.mxu0 0.0
    %70 = vmatpush1.msra.mxu0 0.0
    %71 = vmatprep.subr.mxu0 0.0
    %72 = vmatpush1.msra.mxu0 0.0
    %73 = vmatprep.subr.mxu0 0.0
    %74 = vmatpush1.msra.mxu0 0.0
    %75 = vmatprep.subr.mxu0 0.0
    %76 = vmatpush1.msra.mxu0 0.0
    %77 = vmatprep.subr.mxu0 0.0
    %78 = vmatpush1.msra.mxu0 0.0
    %79 = vmatprep.subr.mxu0 0.0
    %80 = vmatpush1.msra.mxu0 0.0
    %81 = vmatprep.subr.mxu0 0.0
    %82 = vmatpush1.msra.mxu0 0.0
    %83 = vmatprep.subr.mxu0 0.0
    %84 = vmatpush1.msra.mxu0 0.0
    %85 = vmatprep.subr.mxu0 0.0
    %86 = vmatpush1.msra.mxu0 0.0
    %87 = vmatprep.subr.mxu0 0.0
    %88 = vmatpush1.msra.mxu0 0.0
    %89 = vmatprep.subr.mxu0 0.0
    %90 = vmatpush1.msra.mxu0 0.0
    %91 = vmatprep.subr.mxu0 0.0
    %92 = vmatpush1.msra.mxu0 0.0
    %93 = vmatprep.subr.mxu0 0.0
    %94 = vmatpush1.msra.mxu0 %v52
    %95 = vmatprep.subr.mxu0 0.0
    %96 = vmatpush1.msra.mxu0 %v51
    %97 = vmatprep.subr.mxu0 0.0
    %98 = vmatpush1.msra.mxu0 %v50
    %99 = vmatprep.subr.mxu0 0.0
    %100 = vmatpush1.msra.mxu0 %v49
    %101 = vmatprep.subr.mxu0 0.0
    %102 = vmatpush2.msra.mxu0 0.0
    %103 = vmatprep.subr.mxu0 0.0
    %104 = vmatpush2.msra.mxu0 0.0
    %105 = vmatprep.subr.mxu0 0.0
    %106 = vmatpush2.msra.mxu0 0.0
    %107 = vmatprep.subr.mxu0 0.0
    %108 = vmatpush2.msra.mxu0 0.0
    %109 = vmatprep.subr.mxu0 0.0
    %110 = vmatpush2.msra.mxu0 0.0
    %111 = vmatprep.subr.mxu0 0.0
    %112 = vmatpush2.msra.mxu0 0.0
    %113 = vmatprep.subr.mxu0 0.0
    %114 = vmatpush2.msra.mxu0 0.0
    %115 = vmatprep.subr.mxu0 0.0
    %116 = vmatpush2.msra.mxu0 0.0
    %117 = vmatprep.subr.mxu0 0.0
    %118 = vmatpush2.msra.mxu0 0.0
    %119 = vmatprep.subr.mxu0 0.0
    %120 = vmatpush2.msra.mxu0 0.0
    %121 = vmatprep.subr.mxu0 0.0
    %122 = vmatpush2.msra.mxu0 0.0
    %123 = vmatprep.subr.mxu0 0.0
    %124 = vmatpush2.msra.mxu0 0.0
    %125 = vmatprep.subr.mxu0 0.0
    %126 = vmatpush2.msra.mxu0 0.0
    %127 = vmatprep.subr.mxu0 0.0
    %128 = vmatpush2.msra.mxu0 0.0
    %129 = vmatprep.subr.mxu0 0.0
    %130 = vmatpush2.msra.mxu0 0.0
    %131 = vmatprep.subr.mxu0 0.0
    %132 = vmatpush2.msra.mxu0 0.0
    %133 = vmatprep.mubr.f32.mxu0 0.0
    %134 = vmatmul.mubr.f32.gmra.mxu0 %v64
    %v135 = vpop.f32.mrf.mxu0
    %v136 = vadd.f32 %v60, %v135
    %v137 = vpop.f32.mrf.mxu0
    %138 = vmatprep.mubr.f32.mxu0 0.0
    %139 = vmatmul.mubr.f32.gmra.mxu0 %v67
    %v140 = vpop.f32.mrf.mxu0
    %v141 = vadd.f32 %v60, %v140
    %v142 = vpop.f32.mrf.mxu0
    %143 = vdwg.mxu0
    %v144 = vmax.f32 %v136, 0.0
    %v145 = vmax.f32 %v141, 0.0
    %150 = vrot.lane.b32.xlu0 %v49, 80
    %v151 = vpop.permute.xlu0 %150
    %152 = vrot.lane.b32.xlu0 %v50, 80
    %v153 = vpop.permute.xlu0 %152
    %154 = vrot.lane.b32.xlu0 %v51, 80
    %v155 = vpop.permute.xlu0 %154
    %156 = vrot.lane.b32.xlu0 %v52, 80
    %v157 = vpop.permute.xlu0 %156
    %162 = vrot.lane.b32.xlu0 %v60, 80
    %v163 = vpop.permute.xlu0 %162
    %v166 = vsel %vm62, %v144, 0
    %v169 = vsel %vm62, %v145, 0
    %171 = vmatprep.subr.mxu0 0.0
    %172 = vmatpush1.msra.mxu0 0.0
    %173 = vmatprep.subr.mxu0 0.0
    %174 = vmatpush1.msra.mxu0 0.0
    %175 = vmatprep.subr.mxu0 0.0
    %176 = vmatpush1.msra.mxu0 0.0
    %177 = vmatprep.subr.mxu0 0.0
    %178 = vmatpush1.msra.mxu0 0.0
    %179 = vmatprep.subr.mxu0 0.0
    %180 = vmatpush1.msra.mxu0 0.0
    %181 = vmatprep.subr.mxu0 0.0
    %182 = vmatpush1.msra.mxu0 0.0
    %183 = vmatprep.subr.mxu0 0.0
    %184 = vmatpush1.msra.mxu0 0.0
    %185 = vmatprep.subr.mxu0 0.0
    %186 = vmatpush1.msra.mxu0 0.0
    %187 = vmatprep.subr.mxu0 0.0
    %188 = vmatpush1.msra.mxu0 0.0
    %189 = vmatprep.subr.mxu0 0.0
    %190 = vmatpush1.msra.mxu0 0.0
    %191 = vmatprep.subr.mxu0 0.0
    %192 = vmatpush1.msra.mxu0 0.0
    %193 = vmatprep.subr.mxu0 0.0
    %194 = vmatpush1.msra.mxu0 0.0
    %195 = vmatprep.subr.mxu0 0.0
    %196 = vmatpush1.msra.mxu0 %v157
    %197 = vmatprep.subr.mxu0 0.0
    %198 = vmatpush1.msra.mxu0 %v155
    %199 = vmatprep.subr.mxu0 0.0
    %200 = vmatpush1.msra.mxu0 %v153
    %201 = vmatprep.subr.mxu0 0.0
    %202 = vmatpush1.msra.mxu0 %v151
    %203 = vmatprep.subr.mxu0 0.0
    %204 = vmatpush2.msra.mxu0 0.0
    %205 = vmatprep.subr.mxu0 0.0
    %206 = vmatpush2.msra.mxu0 0.0
    %207 = vmatprep.subr.mxu0 0.0
    %208 = vmatpush2.msra.mxu0 0.0
    %209 = vmatprep.subr.mxu0 0.0
    %210 = vmatpush2.msra.mxu0 0.0
    %211 = vmatprep.subr.mxu0 0.0
    %212 = vmatpush2.msra.mxu0 0.0
    %213 = vmatprep.subr.mxu0 0.0
    %214 = vmatpush2.msra.mxu0 0.0
    %215 = vmatprep.subr.mxu0 0.0
    %216 = vmatpush2.msra.mxu0 0.0
    %217 = vmatprep.subr.mxu0 0.0
    %218 = vmatpush2.msra.mxu0 0.0
    %219 = vmatprep.subr.mxu0 0.0
    %220 = vmatpush2.msra.mxu0 0.0
    %221 = vmatprep.subr.mxu0 0.0
    %222 = vmatpush2.msra.mxu0 0.0
    %223 = vmatprep.subr.mxu0 0.0
    %224 = vmatpush2.msra.mxu0 0.0
    %225 = vmatprep.subr.mxu0 0.0
    %226 = vmatpush2.msra.mxu0 0.0
    %227 = vmatprep.subr.mxu0 0.0
    %228 = vmatpush2.msra.mxu0 0.0
    %229 = vmatprep.subr.mxu0 0.0
    %230 = vmatpush2.msra.mxu0 0.0
    %231 = vmatprep.subr.mxu0 0.0
    %232 = vmatpush2.msra.mxu0 0.0
    %233 = vmatprep.subr.mxu0 0.0
    %234 = vmatpush2.msra.mxu0 0.0
    %235 = vmatprep.mubr.f32.mxu0 0.0
    %236 = vmatmul.mubr.f32.gmra.mxu0 %v166
    %v237 = vpop.f32.mrf.mxu0
    %v238 = vadd.f32 %v163, %v237
    %v239 = vpop.f32.mrf.mxu0
    %240 = vmatprep.mubr.f32.mxu0 0.0
    %241 = vmatmul.mubr.f32.gmra.mxu0 %v169
    %v242 = vpop.f32.mrf.mxu0
    %v243 = vadd.f32 %v163, %v242
    %v244 = vpop.f32.mrf.mxu0
    %245 = vdwg.mxu0
    %248 = vrot.lane.b32.xlu0 %v136, 96
    %v249 = vpop.permute.xlu0 %248
    %250 = vrot.lane.b32.xlu0 %v141, 96
    %v251 = vpop.permute.xlu0 %250
    %252 = vrot.lane.b32.xlu0 %v49, 8
    %v253 = vpop.permute.xlu0 %252
    %254 = vrot.lane.b32.xlu0 %v50, 8
    %v255 = vpop.permute.xlu0 %254
    %258 = vrot.lane.b32.xlu0 %v60, 48
    %v259 = vpop.permute.xlu0 %258
    %vm261 = vcmask 130048
    %v262 = vsel %vm261, %v249, 0
    %v264 = vsel %vm261, %v251, 0
    %266 = vmatprep.subr.mxu0 0.0
    %267 = vmatpush1.msra.mxu0 0.0
    %268 = vmatprep.subr.mxu0 0.0
    %269 = vmatpush1.msra.mxu0 0.0
    %270 = vmatprep.subr.mxu0 0.0
    %271 = vmatpush1.msra.mxu0 0.0
    %272 = vmatprep.subr.mxu0 0.0
    %273 = vmatpush1.msra.mxu0 0.0
    %274 = vmatprep.subr.mxu0 0.0
    %275 = vmatpush1.msra.mxu0 0.0
    %276 = vmatprep.subr.mxu0 0.0
    %277 = vmatpush1.msra.mxu0 0.0
    %278 = vmatprep.subr.mxu0 0.0
    %279 = vmatpush1.msra.mxu0 0.0
    %280 = vmatprep.subr.mxu0 0.0
    %281 = vmatpush1.msra.mxu0 0.0
    %282 = vmatprep.subr.mxu0 0.0
    %283 = vmatpush1.msra.mxu0 0.0
    %284 = vmatprep.subr.mxu0 0.0
    %285 = vmatpush1.msra.mxu0 0.0
    %286 = vmatprep.subr.mxu0 0.0
    %287 = vmatpush1.msra.mxu0 0.0
    %288 = vmatprep.subr.mxu0 0.0
    %289 = vmatpush1.msra.mxu0 0.0
    %290 = vmatprep.subr.mxu0 0.0
    %291 = vmatpush1.msra.mxu0 0.0
    %292 = vmatprep.subr.mxu0 0.0
    %293 = vmatpush1.msra.mxu0 0.0
    %294 = vmatprep.subr.mxu0 0.0
    %295 = vmatpush1.msra.mxu0 %v255
    %296 = vmatprep.subr.mxu0 0.0
    %297 = vmatpush1.msra.mxu0 %v253
    %298 = vmatprep.subr.mxu0 0.0
    %299 = vmatpush2.msra.mxu0 0.0
    %300 = vmatprep.subr.mxu0 0.0
    %301 = vmatpush2.msra.mxu0 0.0
    %302 = vmatprep.subr.mxu0 0.0
    %303 = vmatpush2.msra.mxu0 0.0
    %304 = vmatprep.subr.mxu0 0.0
    %305 = vmatpush2.msra.mxu0 0.0
    %306 = vmatprep.subr.mxu0 0.0
    %307 = vmatpush2.msra.mxu0 0.0
    %308 = vmatprep.subr.mxu0 0.0
    %309 = vmatpush2.msra.mxu0 0.0
    %310 = vmatprep.subr.mxu0 0.0
    %311 = vmatpush2.msra.mxu0 0.0
    %312 = vmatprep.subr.mxu0 0.0
    %313 = vmatpush2.msra.mxu0 0.0
    %314 = vmatprep.subr.mxu0 0.0
    %315 = vmatpush2.msra.mxu0 0.0
    %316 = vmatprep.subr.mxu0 0.0
    %317 = vmatpush2.msra.mxu0 0.0
    %318 = vmatprep.subr.mxu0 0.0
    %319 = vmatpush2.msra.mxu0 0.0
    %320 = vmatprep.subr.mxu0 0.0
    %321 = vmatpush2.msra.mxu0 0.0
    %322 = vmatprep.subr.mxu0 0.0
    %323 = vmatpush2.msra.mxu0 0.0
    %324 = vmatprep.subr.mxu0 0.0
    %325 = vmatpush2.msra.mxu0 0.0
    %326 = vmatprep.subr.mxu0 0.0
    %327 = vmatpush2.msra.mxu0 0.0
    %328 = vmatprep.subr.mxu0 0.0
    %329 = vmatpush2.msra.mxu0 0.0
    %330 = vmatprep.mubr.f32.mxu0 0.0
    %331 = vmatmul.mubr.f32.gmra.mxu0 %v262
    %v332 = vpop.f32.mrf.mxu0
    %v333 = vadd.f32 %v259, %v332
    %v334 = vpop.f32.mrf.mxu0
    %335 = vmatprep.mubr.f32.mxu0 0.0
    %336 = vmatmul.mubr.f32.gmra.mxu0 %v264
    %v337 = vpop.f32.mrf.mxu0
    %v338 = vadd.f32 %v259, %v337
    %v339 = vpop.f32.mrf.mxu0
    %340 = vdwg.mxu0
    %v341 = vld [vmem:[%s1] sm:$0x3]
    %v342 = vlaneseq
    %v343 = vand.u32 %v342, 127
    %344 = vset.pattern.permute.xlu0 0
    %345 = vperm.xlu0 %344, %v341
    %v346 = vpop.permute.xlu0 %345
    %vm347 = vcmp.gt.s32.totalorder %v346, %v343
    %v349 = vrot.slane %v243, 7
    %vm351 = vcmask 1040384
    %v352 = vsel %vm351, %v238, %v349
    %355 = vrot.lane.b32.xlu0 %v54, 48
    %v356 = vpop.permute.xlu0 %355
    %357 = vrot.lane.b32.xlu0 %v55, 48
    %v358 = vpop.permute.xlu0 %357
    %v362 = vsel %vm62, 0, 0
    %364 = vmatprep.subr.bf16.mxu0 0
    %365 = vmatpush1.bf16.msra.mxu0 0
    %366 = vmatprep.subr.bf16.mxu0 0
    %367 = vmatpush1.bf16.msra.mxu0 0
    %368 = vmatprep.subr.bf16.mxu0 0
    %369 = vmatpush1.bf16.msra.mxu0 0
    %370 = vmatprep.subr.bf16.mxu0 0
    %371 = vmatpush1.bf16.msra.mxu0 0
    %372 = vmatprep.subr.bf16.mxu0 0
    %373 = vmatpush1.bf16.msra.mxu0 0
    %374 = vmatprep.subr.bf16.mxu0 0
    %375 = vmatpush1.bf16.msra.mxu0 0
    %376 = vmatprep.subr.bf16.mxu0 0
    %377 = vmatpush1.bf16.msra.mxu0 %v358
    %378 = vmatprep.subr.bf16.mxu0 0
    %379 = vmatpush1.bf16.msra.mxu0 %v356
    %380 = vmatprep.subr.bf16.mxu0 0
    %381 = vmatpush2.bf16.msra.mxu0 0
    %382 = vmatprep.subr.bf16.mxu0 0
    %383 = vmatpush2.bf16.msra.mxu0 0
    %384 = vmatprep.subr.bf16.mxu0 0
    %385 = vmatpush2.bf16.msra.mxu0 0
    %386 = vmatprep.subr.bf16.mxu0 0
    %387 = vmatpush2.bf16.msra.mxu0 0
    %388 = vmatprep.subr.bf16.mxu0 0
    %389 = vmatpush2.bf16.msra.mxu0 0
    %390 = vmatprep.subr.bf16.mxu0 0
    %391 = vmatpush2.bf16.msra.mxu0 0
    %392 = vmatprep.subr.bf16.mxu0 0
    %393 = vmatpush2.bf16.msra.mxu0 0
    %394 = vmatprep.subr.bf16.mxu0 0
    %395 = vmatpush2.bf16.msra.mxu0 0
    %396 = vmatprep.mubr.bf16.mxu0 0
    %397 = vmatmul.mubr.bf16.gmra.mxu0 %v362
    %v398 = vpop.f32.mrf.mxu0
    %v399 = vadd.f32 0.0, %v398
    %v400 = vpop.f32.mrf.mxu0
    %v401 = vpop.f32.mrf.mxu0
    %v402 = vpop.f32.mrf.mxu0
    %403 = vdwg.mxu0
    %v404 = vadd.f32 %v352, %v399
    %v405 = vtanh.pop %v404
    %v406 = vsel %vm347, 1, 0
    %407 = vset.pattern.permute.xlu0 0
    %408 = vperm.xlu0 %407, %v406
    %v409 = vpop.permute.xlu0 %408
    %vm410 = vcmp.eq.s32.totalorder %v409, 1
    %v411 = vsel %vm410, %v405, 0.0
    %412 = vrot.lane.b32.xlu0 %v49, 16
    %v413 = vpop.permute.xlu0 %412
    %414 = vrot.lane.b32.xlu0 %v50, 16
    %v415 = vpop.permute.xlu0 %414
    %416 = vrot.lane.b32.xlu0 %v51, 16
    %v417 = vpop.permute.xlu0 %416
    %418 = vrot.lane.b32.xlu0 %v52, 16
    %v419 = vpop.permute.xlu0 %418
    %v425 = vsel %vm62, %v411, 0
    %427 = vmatprep.subr.mxu0 0.0
    %428 = vmatpush1.msra.mxu0 0.0
    %429 = vmatprep.subr.mxu0 0.0
    %430 = vmatpush1.msra.mxu0 0.0
    %431 = vmatprep.subr.mxu0 0.0
    %432 = vmatpush1.msra.mxu0 0.0
    %433 = vmatprep.subr.mxu0 0.0
    %434 = vmatpush1.msra.mxu0 0.0
    %435 = vmatprep.subr.mxu0 0.0
    %436 = vmatpush1.msra.mxu0 0.0
    %437 = vmatprep.subr.mxu0 0.0
    %438 = vmatpush1.msra.mxu0 0.0
    %439 = vmatprep.subr.mxu0 0.0
    %440 = vmatpush1.msra.mxu0 0.0
    %441 = vmatprep.subr.mxu0 0.0
    %442 = vmatpush1.msra.mxu0 0.0
    %443 = vmatprep.subr.mxu0 0.0
    %444 = vmatpush1.msra.mxu0 0.0
    %445 = vmatprep.subr.mxu0 0.0
    %446 = vmatpush1.msra.mxu0 0.0
    %447 = vmatprep.subr.mxu0 0.0
    %448 = vmatpush1.msra.mxu0 0.0
    %449 = vmatprep.subr.mxu0 0.0
    %450 = vmatpush1.msra.mxu0 0.0
    %451 = vmatprep.subr.mxu0 0.0
    %452 = vmatpush1.msra.mxu0 %v419
    %453 = vmatprep.subr.mxu0 0.0
    %454 = vmatpush1.msra.mxu0 %v417
    %455 = vmatprep.subr.mxu0 0.0
    %456 = vmatpush1.msra.mxu0 %v415
    %457 = vmatprep.subr.mxu0 0.0
    %458 = vmatpush1.msra.mxu0 %v413
    %459 = vmatprep.subr.mxu0 0.0
    %460 = vmatpush2.msra.mxu0 0.0
    %461 = vmatprep.subr.mxu0 0.0
    %462 = vmatpush2.msra.mxu0 0.0
    %463 = vmatprep.subr.mxu0 0.0
    %464 = vmatpush2.msra.mxu0 0.0
    %465 = vmatprep.subr.mxu0 0.0
    %466 = vmatpush2.msra.mxu0 0.0
    %467 = vmatprep.subr.mxu0 0.0
    %468 = vmatpush2.msra.mxu0 0.0
    %469 = vmatprep.subr.mxu0 0.0
    %470 = vmatpush2.msra.mxu0 0.0
    %471 = vmatprep.subr.mxu0 0.0
    %472 = vmatpush2.msra.mxu0 0.0
    %473 = vmatprep.subr.mxu0 0.0
    %474 = vmatpush2.msra.mxu0 0.0
    %475 = vmatprep.subr.mxu0 0.0
    %476 = vmatpush2.msra.mxu0 0.0
    %477 = vmatprep.subr.mxu0 0.0
    %478 = vmatpush2.msra.mxu0 0.0
    %479 = vmatprep.subr.mxu0 0.0
    %480 = vmatpush2.msra.mxu0 0.0
    %481 = vmatprep.subr.mxu0 0.0
    %482 = vmatpush2.msra.mxu0 0.0
    %483 = vmatprep.subr.mxu0 0.0
    %484 = vmatpush2.msra.mxu0 0.0
    %485 = vmatprep.subr.mxu0 0.0
    %486 = vmatpush2.msra.mxu0 0.0
    %487 = vmatprep.subr.mxu0 0.0
    %488 = vmatpush2.msra.mxu0 0.0
    %489 = vmatprep.subr.mxu0 0.0
    %490 = vmatpush2.msra.mxu0 0.0
    %491 = vmatprep.mubr.f32.mxu0 0.0
    %492 = vmatmul.mubr.f32.gmra.mxu0 %v425
    %v493 = vpop.f32.mrf.mxu0
    %v494 = vadd.f32 0.0, %v493
    %v495 = vpop.f32.mrf.mxu0
    %496 = vdwg.mxu0
    %v498 = vrot.slane %v238, 1
    %v500 = vsel %vm351, %v498, %v243
    %v501 = vpack.c.bf16 %v411, %v411
    %v503 = vsel %vm62, %v501, 0
    %505 = vmatprep.subr.bf16.mxu0 0
    %506 = vmatpush1.bf16.msra.mxu0 0
    %507 = vmatprep.subr.bf16.mxu0 0
    %508 = vmatpush1.bf16.msra.mxu0 0
    %509 = vmatprep.subr.bf16.mxu0 0
    %510 = vmatpush1.bf16.msra.mxu0 0
    %511 = vmatprep.subr.bf16.mxu0 0
    %512 = vmatpush1.bf16.msra.mxu0 0
    %513 = vmatprep.subr.bf16.mxu0 0
    %514 = vmatpush1.bf16.msra.mxu0 0
    %515 = vmatprep.subr.bf16.mxu0 0
    %516 = vmatpush1.bf16.msra.mxu0 0
    %517 = vmatprep.subr.bf16.mxu0 0
    %518 = vmatpush1.bf16.msra.mxu0 %v358
    %519 = vmatprep.subr.bf16.mxu0 0
    %520 = vmatpush1.bf16.msra.mxu0 %v356
    %521 = vmatprep.subr.bf16.mxu0 0
    %522 = vmatpush2.bf16.msra.mxu0 0
    %523 = vmatprep.subr.bf16.mxu0 0
    %524 = vmatpush2.bf16.msra.mxu0 0
    %525 = vmatprep.subr.bf16.mxu0 0
    %526 = vmatpush2.bf16.msra.mxu0 0
    %527 = vmatprep.subr.bf16.mxu0 0
    %528 = vmatpush2.bf16.msra.mxu0 0
    %529 = vmatprep.subr.bf16.mxu0 0
    %530 = vmatpush2.bf16.msra.mxu0 0
    %531 = vmatprep.subr.bf16.mxu0 0
    %532 = vmatpush2.bf16.msra.mxu0 0
    %533 = vmatprep.subr.bf16.mxu0 0
    %534 = vmatpush2.bf16.msra.mxu0 0
    %535 = vmatprep.subr.bf16.mxu0 0
    %536 = vmatpush2.bf16.msra.mxu0 0
    %537 = vmatprep.mubr.bf16.mxu0 0
    %538 = vmatmul.mubr.bf16.gmra.mxu0 %v503
    %v539 = vpop.f32.mrf.mxu0
    %v540 = vadd.f32 0.0, %v539
    %v541 = vpop.f32.mrf.mxu0
    %v542 = vpop.f32.mrf.mxu0
    %v543 = vpop.f32.mrf.mxu0
    %544 = vdwg.mxu0
    %v545 = vadd.f32 %v500, %v540
    %v546 = vtanh.pop %v545
    %547 = vset.pattern.permute.xlu0 1
    %548 = vperm.xlu0 %547, %v406
    %v549 = vpop.permute.xlu0 %548
    %vm550 = vcmp.eq.s32.totalorder %v549, 1
    %v551 = vsel %vm550, %v546, 0.0
    %v552 = vsel %vm550, %v546, %v411
    %v554 = vsel %vm62, %v551, 0
    %556 = vmatprep.subr.mxu0 0.0
    %557 = vmatpush1.msra.mxu0 0.0
    %558 = vmatprep.subr.mxu0 0.0
    %559 = vmatpush1.msra.mxu0 0.0
    %560 = vmatprep.subr.mxu0 0.0
    %561 = vmatpush1.msra.mxu0 0.0
    %562 = vmatprep.subr.mxu0 0.0
    %563 = vmatpush1.msra.mxu0 0.0
    %564 = vmatprep.subr.mxu0 0.0
    %565 = vmatpush1.msra.mxu0 0.0
    %566 = vmatprep.subr.mxu0 0.0
    %567 = vmatpush1.msra.mxu0 0.0
    %568 = vmatprep.subr.mxu0 0.0
    %569 = vmatpush1.msra.mxu0 0.0
    %570 = vmatprep.subr.mxu0 0.0
    %571 = vmatpush1.msra.mxu0 0.0
    %572 = vmatprep.subr.mxu0 0.0
    %573 = vmatpush1.msra.mxu0 0.0
    %574 = vmatprep.subr.mxu0 0.0
    %575 = vmatpush1.msra.mxu0 0.0
    %576 = vmatprep.subr.mxu0 0.0
    %577 = vmatpush1.msra.mxu0 0.0
    %578 = vmatprep.subr.mxu0 0.0
    %579 = vmatpush1.msra.mxu0 0.0
    %580 = vmatprep.subr.mxu0 0.0
    %581 = vmatpush1.msra.mxu0 %v419
    %582 = vmatprep.subr.mxu0 0.0
    %583 = vmatpush1.msra.mxu0 %v417
    %584 = vmatprep.subr.mxu0 0.0
    %585 = vmatpush1.msra.mxu0 %v415
    %586 = vmatprep.subr.mxu0 0.0
    %587 = vmatpush1.msra.mxu0 %v413
    %588 = vmatprep.subr.mxu0 0.0
    %589 = vmatpush2.msra.mxu0 0.0
    %590 = vmatprep.subr.mxu0 0.0
    %591 = vmatpush2.msra.mxu0 0.0
    %592 = vmatprep.subr.mxu0 0.0
    %593 = vmatpush2.msra.mxu0 0.0
    %594 = vmatprep.subr.mxu0 0.0
    %595 = vmatpush2.msra.mxu0 0.0
    %596 = vmatprep.subr.mxu0 0.0
    %597 = vmatpush2.msra.mxu0 0.0
    %598 = vmatprep.subr.mxu0 0.0
    %599 = vmatpush2.msra.mxu0 0.0
    %600 = vmatprep.subr.mxu0 0.0
    %601 = vmatpush2.msra.mxu0 0.0
    %602 = vmatprep.subr.mxu0 0.0
    %603 = vmatpush2.msra.mxu0 0.0
    %604 = vmatprep.subr.mxu0 0.0
    %605 = vmatpush2.msra.mxu0 0.0
    %606 = vmatprep.subr.mxu0 0.0
    %607 = vmatpush2.msra.mxu0 0.0
    %608 = vmatprep.subr.mxu0 0.0
    %609 = vmatpush2.msra.mxu0 0.0
    %610 = vmatprep.subr.mxu0 0.0
    %611 = vmatpush2.msra.mxu0 0.0
    %612 = vmatprep.subr.mxu0 0.0
    %613 = vmatpush2.msra.mxu0 0.0
    %614 = vmatprep.subr.mxu0 0.0
    %615 = vmatpush2.msra.mxu0 0.0
    %616 = vmatprep.subr.mxu0 0.0
    %617 = vmatpush2.msra.mxu0 0.0
    %618 = vmatprep.subr.mxu0 0.0
    %619 = vmatpush2.msra.mxu0 0.0
    %620 = vmatprep.mubr.f32.mxu0 0.0
    %621 = vmatmul.mubr.f32.gmra.mxu0 %v554
    %v622 = vpop.f32.mrf.mxu0
    %v623 = vadd.f32 0.0, %v622
    %v624 = vpop.f32.mrf.mxu0
    %625 = vdwg.mxu0
    %v626 = vrot.slane %v238, 2
    %v628 = vrot.slane %v243, 1
    %v630 = vsel %vm351, %v626, %v628
    %v631 = vpack.c.bf16 %v552, %v552
    %v633 = vsel %vm62, %v631, 0
    %635 = vmatprep.subr.bf16.mxu0 0
    %636 = vmatpush1.bf16.msra.mxu0 0
    %637 = vmatprep.subr.bf16.mxu0 0
    %638 = vmatpush1.bf16.msra.mxu0 0
    %639 = vmatprep.subr.bf16.mxu0 0
    %640 = vmatpush1.bf16.msra.mxu0 0
    %641 = vmatprep.subr.bf16.mxu0 0
    %642 = vmatpush1.bf16.msra.mxu0 0
    %643 = vmatprep.subr.bf16.mxu0 0
    %644 = vmatpush1.bf16.msra.mxu0 0
    %645 = vmatprep.subr.bf16.mxu0 0
    %646 = vmatpush1.bf16.msra.mxu0 0
    %647 = vmatprep.subr.bf16.mxu0 0
    %648 = vmatpush1.bf16.msra.mxu0 %v358
    %649 = vmatprep.subr.bf16.mxu0 0
    %650 = vmatpush1.bf16.msra.mxu0 %v356
    %651 = vmatprep.subr.bf16.mxu0 0
    %652 = vmatpush2.bf16.msra.mxu0 0
    %653 = vmatprep.subr.bf16.mxu0 0
    %654 = vmatpush2.bf16.msra.mxu0 0
    %655 = vmatprep.subr.bf16.mxu0 0
    %656 = vmatpush2.bf16.msra.mxu0 0
    %657 = vmatprep.subr.bf16.mxu0 0
    %658 = vmatpush2.bf16.msra.mxu0 0
    %659 = vmatprep.subr.bf16.mxu0 0
    %660 = vmatpush2.bf16.msra.mxu0 0
    %661 = vmatprep.subr.bf16.mxu0 0
    %662 = vmatpush2.bf16.msra.mxu0 0
    %663 = vmatprep.subr.bf16.mxu0 0
    %664 = vmatpush2.bf16.msra.mxu0 0
    %665 = vmatprep.subr.bf16.mxu0 0
    %666 = vmatpush2.bf16.msra.mxu0 0
    %667 = vmatprep.mubr.bf16.mxu0 0
    %668 = vmatmul.mubr.bf16.gmra.mxu0 %v633
    %v669 = vpop.f32.mrf.mxu0
    %v670 = vadd.f32 0.0, %v669
    %v671 = vpop.f32.mrf.mxu0
    %v672 = vpop.f32.mrf.mxu0
    %v673 = vpop.f32.mrf.mxu0
    %674 = vdwg.mxu0
    %v675 = vadd.f32 %v630, %v670
    %v676 = vtanh.pop %v675
    %677 = vset.pattern.permute.xlu0 2
    %678 = vperm.xlu0 %677, %v406
    %v679 = vpop.permute.xlu0 %678
    %vm680 = vcmp.eq.s32.totalorder %v679, 1
    %v681 = vsel %vm680, %v676, 0.0
    %v682 = vsel %vm680, %v676, %v552
    %v684 = vsel %vm62, %v681, 0
    %686 = vmatprep.subr.mxu0 0.0
    %687 = vmatpush1.msra.mxu0 0.0
    %688 = vmatprep.subr.mxu0 0.0
    %689 = vmatpush1.msra.mxu0 0.0
    %690 = vmatprep.subr.mxu0 0.0
    %691 = vmatpush1.msra.mxu0 0.0
    %692 = vmatprep.subr.mxu0 0.0
    %693 = vmatpush1.msra.mxu0 0.0
    %694 = vmatprep.subr.mxu0 0.0
    %695 = vmatpush1.msra.mxu0 0.0
    %696 = vmatprep.subr.mxu0 0.0
    %697 = vmatpush1.msra.mxu0 0.0
    %698 = vmatprep.subr.mxu0 0.0
    %699 = vmatpush1.msra.mxu0 0.0
    %700 = vmatprep.subr.mxu0 0.0
    %701 = vmatpush1.msra.mxu0 0.0
    %702 = vmatprep.subr.mxu0 0.0
    %703 = vmatpush1.msra.mxu0 0.0
    %704 = vmatprep.subr.mxu0 0.0
    %705 = vmatpush1.msra.mxu0 0.0
    %706 = vmatprep.subr.mxu0 0.0
    %707 = vmatpush1.msra.mxu0 0.0
    %708 = vmatprep.subr.mxu0 0.0
    %709 = vmatpush1.msra.mxu0 0.0
    %710 = vmatprep.subr.mxu0 0.0
    %711 = vmatpush1.msra.mxu0 %v419
    %712 = vmatprep.subr.mxu0 0.0
    %713 = vmatpush1.msra.mxu0 %v417
    %714 = vmatprep.subr.mxu0 0.0
    %715 = vmatpush1.msra.mxu0 %v415
    %716 = vmatprep.subr.mxu0 0.0
    %717 = vmatpush1.msra.mxu0 %v413
    %718 = vmatprep.subr.mxu0 0.0
    %719 = vmatpush2.msra.mxu0 0.0
    %720 = vmatprep.subr.mxu0 0.0
    %721 = vmatpush2.msra.mxu0 0.0
    %722 = vmatprep.subr.mxu0 0.0
    %723 = vmatpush2.msra.mxu0 0.0
    %724 = vmatprep.subr.mxu0 0.0
    %725 = vmatpush2.msra.mxu0 0.0
    %726 = vmatprep.subr.mxu0 0.0
    %727 = vmatpush2.msra.mxu0 0.0
    %728 = vmatprep.subr.mxu0 0.0
    %729 = vmatpush2.msra.mxu0 0.0
    %730 = vmatprep.subr.mxu0 0.0
    %731 = vmatpush2.msra.mxu0 0.0
    %732 = vmatprep.subr.mxu0 0.0
    %733 = vmatpush2.msra.mxu0 0.0
    %734 = vmatprep.subr.mxu0 0.0
    %735 = vmatpush2.msra.mxu0 0.0
    %736 = vmatprep.subr.mxu0 0.0
    %737 = vmatpush2.msra.mxu0 0.0
    %738 = vmatprep.subr.mxu0 0.0
    %739 = vmatpush2.msra.mxu0 0.0
    %740 = vmatprep.subr.mxu0 0.0
    %741 = vmatpush2.msra.mxu0 0.0
    %742 = vmatprep.subr.mxu0 0.0
    %743 = vmatpush2.msra.mxu0 0.0
    %744 = vmatprep.subr.mxu0 0.0
    %745 = vmatpush2.msra.mxu0 0.0
    %746 = vmatprep.subr.mxu0 0.0
    %747 = vmatpush2.msra.mxu0 0.0
    %748 = vmatprep.subr.mxu0 0.0
    %749 = vmatpush2.msra.mxu0 0.0
    %750 = vmatprep.mubr.f32.mxu0 0.0
    %751 = vmatmul.mubr.f32.gmra.mxu0 %v684
    %v752 = vpop.f32.mrf.mxu0
    %v753 = vadd.f32 0.0, %v752
    %v754 = vpop.f32.mrf.mxu0
    %755 = vdwg.mxu0
    %v756 = vrot.slane %v238, 3
    %v758 = vrot.slane %v243, 2
    %v760 = vsel %vm351, %v756, %v758
    %v761 = vpack.c.bf16 %v682, %v682
    %v763 = vsel %vm62, %v761, 0
    %765 = vmatprep.subr.bf16.mxu0 0
    %766 = vmatpush1.bf16.msra.mxu0 0
    %767 = vmatprep.subr.bf16.mxu0 0
    %768 = vmatpush1.bf16.msra.mxu0 0
    %769 = vmatprep.subr.bf16.mxu0 0
    %770 = vmatpush1.bf16.msra.mxu0 0
    %771 = vmatprep.subr.bf16.mxu0 0
    %772 = vmatpush1.bf16.msra.mxu0 0
    %773 = vmatprep.subr.bf16.mxu0 0
    %774 = vmatpush1.bf16.msra.mxu0 0
    %775 = vmatprep.subr.bf16.mxu0 0
    %776 = vmatpush1.bf16.msra.mxu0 0
    %777 = vmatprep.subr.bf16.mxu0 0
    %778 = vmatpush1.bf16.msra.mxu0 %v358
    %779 = vmatprep.subr.bf16.mxu0 0
    %780 = vmatpush1.bf16.msra.mxu0 %v356
    %781 = vmatprep.subr.bf16.mxu0 0
    %782 = vmatpush2.bf16.msra.mxu0 0
    %783 = vmatprep.subr.bf16.mxu0 0
    %784 = vmatpush2.bf16.msra.mxu0 0
    %785 = vmatprep.subr.bf16.mxu0 0
    %786 = vmatpush2.bf16.msra.mxu0 0
    %787 = vmatprep.subr.bf16.mxu0 0
    %788 = vmatpush2.bf16.msra.mxu0 0
    %789 = vmatprep.subr.bf16.mxu0 0
    %790 = vmatpush2.bf16.msra.mxu0 0
    %791 = vmatprep.subr.bf16.mxu0 0
    %792 = vmatpush2.bf16.msra.mxu0 0
    %793 = vmatprep.subr.bf16.mxu0 0
    %794 = vmatpush2.bf16.msra.mxu0 0
    %795 = vmatprep.subr.bf16.mxu0 0
    %796 = vmatpush2.bf16.msra.mxu0 0
    %797 = vmatprep.mubr.bf16.mxu0 0
    %798 = vmatmul.mubr.bf16.gmra.mxu0 %v763
    %v799 = vpop.f32.mrf.mxu0
    %v800 = vadd.f32 0.0, %v799
    %v801 = vpop.f32.mrf.mxu0
    %v802 = vpop.f32.mrf.mxu0
    %v803 = vpop.f32.mrf.mxu0
    %804 = vdwg.mxu0
    %v805 = vadd.f32 %v760, %v800
    %v806 = vtanh.pop %v805
    %807 = vset.pattern.permute.xlu0 3
    %808 = vperm.xlu0 %807, %v406
    %v809 = vpop.permute.xlu0 %808
    %vm810 = vcmp.eq.s32.totalorder %v809, 1
    %v811 = vsel %vm810, %v806, 0.0
    %v812 = vsel %vm810, %v806, %v682
    %v814 = vsel %vm62, %v811, 0
    %816 = vmatprep.subr.mxu0 0.0
    %817 = vmatpush1.msra.mxu0 0.0
    %818 = vmatprep.subr.mxu0 0.0
    %819 = vmatpush1.msra.mxu0 0.0
    %820 = vmatprep.subr.mxu0 0.0
    %821 = vmatpush1.msra.mxu0 0.0
    %822 = vmatprep.subr.mxu0 0.0
    %823 = vmatpush1.msra.mxu0 0.0
    %824 = vmatprep.subr.mxu0 0.0
    %825 = vmatpush1.msra.mxu0 0.0
    %826 = vmatprep.subr.mxu0 0.0
    %827 = vmatpush1.msra.mxu0 0.0
    %828 = vmatprep.subr.mxu0 0.0
    %829 = vmatpush1.msra.mxu0 0.0
    %830 = vmatprep.subr.mxu0 0.0
    %831 = vmatpush1.msra.mxu0 0.0
    %832 = vmatprep.subr.mxu0 0.0
    %833 = vmatpush1.msra.mxu0 0.0
    %834 = vmatprep.subr.mxu0 0.0
    %835 = vmatpush1.msra.mxu0 0.0
    %836 = vmatprep.subr.mxu0 0.0
    %837 = vmatpush1.msra.mxu0 0.0
    %838 = vmatprep.subr.mxu0 0.0
    %839 = vmatpush1.msra.mxu0 0.0
    %840 = vmatprep.subr.mxu0 0.0
    %841 = vmatpush1.msra.mxu0 %v419
    %842 = vmatprep.subr.mxu0 0.0
    %843 = vmatpush1.msra.mxu0 %v417
    %844 = vmatprep.subr.mxu0 0.0
    %845 = vmatpush1.msra.mxu0 %v415
    %846 = vmatprep.subr.mxu0 0.0
    %847 = vmatpush1.msra.mxu0 %v413
    %848 = vmatprep.subr.mxu0 0.0
    %849 = vmatpush2.msra.mxu0 0.0
    %850 = vmatprep.subr.mxu0 0.0
    %851 = vmatpush2.msra.mxu0 0.0
    %852 = vmatprep.subr.mxu0 0.0
    %853 = vmatpush2.msra.mxu0 0.0
    %854 = vmatprep.subr.mxu0 0.0
    %855 = vmatpush2.msra.mxu0 0.0
    %856 = vmatprep.subr.mxu0 0.0
    %857 = vmatpush2.msra.mxu0 0.0
    %858 = vmatprep.subr.mxu0 0.0
    %859 = vmatpush2.msra.mxu0 0.0
    %860 = vmatprep.subr.mxu0 0.0
    %861 = vmatpush2.msra.mxu0 0.0
    %862 = vmatprep.subr.mxu0 0.0
    %863 = vmatpush2.msra.mxu0 0.0
    %864 = vmatprep.subr.mxu0 0.0
    %865 = vmatpush2.msra.mxu0 0.0
    %866 = vmatprep.subr.mxu0 0.0
    %867 = vmatpush2.msra.mxu0 0.0
    %868 = vmatprep.subr.mxu0 0.0
    %869 = vmatpush2.msra.mxu0 0.0
    %870 = vmatprep.subr.mxu0 0.0
    %871 = vmatpush2.msra.mxu0 0.0
    %872 = vmatprep.subr.mxu0 0.0
    %873 = vmatpush2.msra.mxu0 0.0
    %874 = vmatprep.subr.mxu0 0.0
    %875 = vmatpush2.msra.mxu0 0.0
    %876 = vmatprep.subr.mxu0 0.0
    %877 = vmatpush2.msra.mxu0 0.0
    %878 = vmatprep.subr.mxu0 0.0
    %879 = vmatpush2.msra.mxu0 0.0
    %880 = vmatprep.mubr.f32.mxu0 0.0
    %881 = vmatmul.mubr.f32.gmra.mxu0 %v814
    %v882 = vpop.f32.mrf.mxu0
    %v883 = vadd.f32 0.0, %v882
    %v884 = vpop.f32.mrf.mxu0
    %885 = vdwg.mxu0
    %v886 = vrot.slane %v238, 4
    %v888 = vrot.slane %v243, 3
    %v890 = vsel %vm351, %v886, %v888
    %v891 = vpack.c.bf16 %v812, %v812
    %v893 = vsel %vm62, %v891, 0
    %895 = vmatprep.subr.bf16.mxu0 0
    %896 = vmatpush1.bf16.msra.mxu0 0
    %897 = vmatprep.subr.bf16.mxu0 0
    %898 = vmatpush1.bf16.msra.mxu0 0
    %899 = vmatprep.subr.bf16.mxu0 0
    %900 = vmatpush1.bf16.msra.mxu0 0
    %901 = vmatprep.subr.bf16.mxu0 0
    %902 = vmatpush1.bf16.msra.mxu0 0
    %903 = vmatprep.subr.bf16.mxu0 0
    %904 = vmatpush1.bf16.msra.mxu0 0
    %905 = vmatprep.subr.bf16.mxu0 0
    %906 = vmatpush1.bf16.msra.mxu0 0
    %907 = vmatprep.subr.bf16.mxu0 0
    %908 = vmatpush1.bf16.msra.mxu0 %v358
    %909 = vmatprep.subr.bf16.mxu0 0
    %910 = vmatpush1.bf16.msra.mxu0 %v356
    %911 = vmatprep.subr.bf16.mxu0 0
    %912 = vmatpush2.bf16.msra.mxu0 0
    %913 = vmatprep.subr.bf16.mxu0 0
    %914 = vmatpush2.bf16.msra.mxu0 0
    %915 = vmatprep.subr.bf16.mxu0 0
    %916 = vmatpush2.bf16.msra.mxu0 0
    %917 = vmatprep.subr.bf16.mxu0 0
    %918 = vmatpush2.bf16.msra.mxu0 0
    %919 = vmatprep.subr.bf16.mxu0 0
    %920 = vmatpush2.bf16.msra.mxu0 0
    %921 = vmatprep.subr.bf16.mxu0 0
    %922 = vmatpush2.bf16.msra.mxu0 0
    %923 = vmatprep.subr.bf16.mxu0 0
    %924 = vmatpush2.bf16.msra.mxu0 0
    %925 = vmatprep.subr.bf16.mxu0 0
    %926 = vmatpush2.bf16.msra.mxu0 0
    %927 = vmatprep.mubr.bf16.mxu0 0
    %928 = vmatmul.mubr.bf16.gmra.mxu0 %v893
    %v929 = vpop.f32.mrf.mxu0
    %v930 = vadd.f32 0.0, %v929
    %v931 = vpop.f32.mrf.mxu0
    %v932 = vpop.f32.mrf.mxu0
    %v933 = vpop.f32.mrf.mxu0
    %934 = vdwg.mxu0
    %v935 = vadd.f32 %v890, %v930
    %v936 = vtanh.pop %v935
    %937 = vset.pattern.permute.xlu0 4
    %938 = vperm.xlu0 %937, %v406
    %v939 = vpop.permute.xlu0 %938
    %vm940 = vcmp.eq.s32.totalorder %v939, 1
    %v941 = vsel %vm940, %v936, 0.0
    %v942 = vsel %vm940, %v936, %v812
    %v944 = vsel %vm62, %v941, 0
    %946 = vmatprep.subr.mxu0 0.0
    %947 = vmatpush1.msra.mxu0 0.0
    %948 = vmatprep.subr.mxu0 0.0
    %949 = vmatpush1.msra.mxu0 0.0
    %950 = vmatprep.subr.mxu0 0.0
    %951 = vmatpush1.msra.mxu0 0.0
    %952 = vmatprep.subr.mxu0 0.0
    %953 = vmatpush1.msra.mxu0 0.0
    %954 = vmatprep.subr.mxu0 0.0
    %955 = vmatpush1.msra.mxu0 0.0
    %956 = vmatprep.subr.mxu0 0.0
    %957 = vmatpush1.msra.mxu0 0.0
    %958 = vmatprep.subr.mxu0 0.0
    %959 = vmatpush1.msra.mxu0 0.0
    %960 = vmatprep.subr.mxu0 0.0
    %961 = vmatpush1.msra.mxu0 0.0
    %962 = vmatprep.subr.mxu0 0.0
    %963 = vmatpush1.msra.mxu0 0.0
    %964 = vmatprep.subr.mxu0 0.0
    %965 = vmatpush1.msra.mxu0 0.0
    %966 = vmatprep.subr.mxu0 0.0
    %967 = vmatpush1.msra.mxu0 0.0
    %968 = vmatprep.subr.mxu0 0.0
    %969 = vmatpush1.msra.mxu0 0.0
    %970 = vmatprep.subr.mxu0 0.0
    %971 = vmatpush1.msra.mxu0 %v419
    %972 = vmatprep.subr.mxu0 0.0
    %973 = vmatpush1.msra.mxu0 %v417
    %974 = vmatprep.subr.mxu0 0.0
    %975 = vmatpush1.msra.mxu0 %v415
    %976 = vmatprep.subr.mxu0 0.0
    %977 = vmatpush1.msra.mxu0 %v413
    %978 = vmatprep.subr.mxu0 0.0
    %979 = vmatpush2.msra.mxu0 0.0
    %980 = vmatprep.subr.mxu0 0.0
    %981 = vmatpush2.msra.mxu0 0.0
    %982 = vmatprep.subr.mxu0 0.0
    %983 = vmatpush2.msra.mxu0 0.0
    %984 = vmatprep.subr.mxu0 0.0
    %985 = vmatpush2.msra.mxu0 0.0
    %986 = vmatprep.subr.mxu0 0.0
    %987 = vmatpush2.msra.mxu0 0.0
    %988 = vmatprep.subr.mxu0 0.0
    %989 = vmatpush2.msra.mxu0 0.0
    %990 = vmatprep.subr.mxu0 0.0
    %991 = vmatpush2.msra.mxu0 0.0
    %992 = vmatprep.subr.mxu0 0.0
    %993 = vmatpush2.msra.mxu0 0.0
    %994 = vmatprep.subr.mxu0 0.0
    %995 = vmatpush2.msra.mxu0 0.0
    %996 = vmatprep.subr.mxu0 0.0
    %997 = vmatpush2.msra.mxu0 0.0
    %998 = vmatprep.subr.mxu0 0.0
    %999 = vmatpush2.msra.mxu0 0.0
    %1000 = vmatprep.subr.mxu0 0.0
    %1001 = vmatpush2.msra.mxu0 0.0
    %1002 = vmatprep.subr.mxu0 0.0
    %1003 = vmatpush2.msra.mxu0 0.0
    %1004 = vmatprep.subr.mxu0 0.0
    %1005 = vmatpush2.msra.mxu0 0.0
    %1006 = vmatprep.subr.mxu0 0.0
    %1007 = vmatpush2.msra.mxu0 0.0
    %1008 = vmatprep.subr.mxu0 0.0
    %1009 = vmatpush2.msra.mxu0 0.0
    %1010 = vmatprep.mubr.f32.mxu0 0.0
    %1011 = vmatmul.mubr.f32.gmra.mxu0 %v944
    %v1012 = vpop.f32.mrf.mxu0
    %v1013 = vadd.f32 0.0, %v1012
    %v1014 = vpop.f32.mrf.mxu0
    %1015 = vdwg.mxu0
    %v1016 = vrot.slane %v238, 5
    %v1018 = vrot.slane %v243, 4
    %v1020 = vsel %vm351, %v1016, %v1018
    %v1021 = vpack.c.bf16 %v942, %v942
    %v1023 = vsel %vm62, %v1021, 0
    %1025 = vmatprep.subr.bf16.mxu0 0
    %1026 = vmatpush1.bf16.msra.mxu0 0
    %1027 = vmatprep.subr.bf16.mxu0 0
    %1028 = vmatpush1.bf16.msra.mxu0 0
    %1029 = vmatprep.subr.bf16.mxu0 0
    %1030 = vmatpush1.bf16.msra.mxu0 0
    %1031 = vmatprep.subr.bf16.mxu0 0
    %1032 = vmatpush1.bf16.msra.mxu0 0
    %1033 = vmatprep.subr.bf16.mxu0 0
    %1034 = vmatpush1.bf16.msra.mxu0 0
    %1035 = vmatprep.subr.bf16.mxu0 0
    %1036 = vmatpush1.bf16.msra.mxu0 0
    %1037 = vmatprep.subr.bf16.mxu0 0
    %1038 = vmatpush1.bf16.msra.mxu0 %v358
    %1039 = vmatprep.subr.bf16.mxu0 0
    %1040 = vmatpush1.bf16.msra.mxu0 %v356
    %1041 = vmatprep.subr.bf16.mxu0 0
    %1042 = vmatpush2.bf16.msra.mxu0 0
    %1043 = vmatprep.subr.bf16.mxu0 0
    %1044 = vmatpush2.bf16.msra.mxu0 0
    %1045 = vmatprep.subr.bf16.mxu0 0
    %1046 = vmatpush2.bf16.msra.mxu0 0
    %1047 = vmatprep.subr.bf16.mxu0 0
    %1048 = vmatpush2.bf16.msra.mxu0 0
    %1049 = vmatprep.subr.bf16.mxu0 0
    %1050 = vmatpush2.bf16.msra.mxu0 0
    %1051 = vmatprep.subr.bf16.mxu0 0
    %1052 = vmatpush2.bf16.msra.mxu0 0
    %1053 = vmatprep.subr.bf16.mxu0 0
    %1054 = vmatpush2.bf16.msra.mxu0 0
    %1055 = vmatprep.subr.bf16.mxu0 0
    %1056 = vmatpush2.bf16.msra.mxu0 0
    %1057 = vmatprep.mubr.bf16.mxu0 0
    %1058 = vmatmul.mubr.bf16.gmra.mxu0 %v1023
    %v1059 = vpop.f32.mrf.mxu0
    %v1060 = vadd.f32 0.0, %v1059
    %v1061 = vpop.f32.mrf.mxu0
    %v1062 = vpop.f32.mrf.mxu0
    %v1063 = vpop.f32.mrf.mxu0
    %1064 = vdwg.mxu0
    %v1065 = vadd.f32 %v1020, %v1060
    %v1066 = vtanh.pop %v1065
    %1067 = vset.pattern.permute.xlu0 5
    %1068 = vperm.xlu0 %1067, %v406
    %v1069 = vpop.permute.xlu0 %1068
    %vm1070 = vcmp.eq.s32.totalorder %v1069, 1
    %v1071 = vsel %vm1070, %v1066, 0.0
    %v1072 = vsel %vm1070, %v1066, %v942
    %v1074 = vsel %vm62, %v1071, 0
    %1076 = vmatprep.subr.mxu0 0.0
    %1077 = vmatpush1.msra.mxu0 0.0
    %1078 = vmatprep.subr.mxu0 0.0
    %1079 = vmatpush1.msra.mxu0 0.0
    %1080 = vmatprep.subr.mxu0 0.0
    %1081 = vmatpush1.msra.mxu0 0.0
    %1082 = vmatprep.subr.mxu0 0.0
    %1083 = vmatpush1.msra.mxu0 0.0
    %1084 = vmatprep.subr.mxu0 0.0
    %1085 = vmatpush1.msra.mxu0 0.0
    %1086 = vmatprep.subr.mxu0 0.0
    %1087 = vmatpush1.msra.mxu0 0.0
    %1088 = vmatprep.subr.mxu0 0.0
    %1089 = vmatpush1.msra.mxu0 0.0
    %1090 = vmatprep.subr.mxu0 0.0
    %1091 = vmatpush1.msra.mxu0 0.0
    %1092 = vmatprep.subr.mxu0 0.0
    %1093 = vmatpush1.msra.mxu0 0.0
    %1094 = vmatprep.subr.mxu0 0.0
    %1095 = vmatpush1.msra.mxu0 0.0
    %1096 = vmatprep.subr.mxu0 0.0
    %1097 = vmatpush1.msra.mxu0 0.0
    %1098 = vmatprep.subr.mxu0 0.0
    %1099 = vmatpush1.msra.mxu0 0.0
    %1100 = vmatprep.subr.mxu0 0.0
    %1101 = vmatpush1.msra.mxu0 %v419
    %1102 = vmatprep.subr.mxu0 0.0
    %1103 = vmatpush1.msra.mxu0 %v417
    %1104 = vmatprep.subr.mxu0 0.0
    %1105 = vmatpush1.msra.mxu0 %v415
    %1106 = vmatprep.subr.mxu0 0.0
    %1107 = vmatpush1.msra.mxu0 %v413
    %1108 = vmatprep.subr.mxu0 0.0
    %1109 = vmatpush2.msra.mxu0 0.0
    %1110 = vmatprep.subr.mxu0 0.0
    %1111 = vmatpush2.msra.mxu0 0.0
    %1112 = vmatprep.subr.mxu0 0.0
    %1113 = vmatpush2.msra.mxu0 0.0
    %1114 = vmatprep.subr.mxu0 0.0
    %1115 = vmatpush2.msra.mxu0 0.0
    %1116 = vmatprep.subr.mxu0 0.0
    %1117 = vmatpush2.msra.mxu0 0.0
    %1118 = vmatprep.subr.mxu0 0.0
    %1119 = vmatpush2.msra.mxu0 0.0
    %1120 = vmatprep.subr.mxu0 0.0
    %1121 = vmatpush2.msra.mxu0 0.0
    %1122 = vmatprep.subr.mxu0 0.0
    %1123 = vmatpush2.msra.mxu0 0.0
    %1124 = vmatprep.subr.mxu0 0.0
    %1125 = vmatpush2.msra.mxu0 0.0
    %1126 = vmatprep.subr.mxu0 0.0
    %1127 = vmatpush2.msra.mxu0 0.0
    %1128 = vmatprep.subr.mxu0 0.0
    %1129 = vmatpush2.msra.mxu0 0.0
    %1130 = vmatprep.subr.mxu0 0.0
    %1131 = vmatpush2.msra.mxu0 0.0
    %1132 = vmatprep.subr.mxu0 0.0
    %1133 = vmatpush2.msra.mxu0 0.0
    %1134 = vmatprep.subr.mxu0 0.0
    %1135 = vmatpush2.msra.mxu0 0.0
    %1136 = vmatprep.subr.mxu0 0.0
    %1137 = vmatpush2.msra.mxu0 0.0
    %1138 = vmatprep.subr.mxu0 0.0
    %1139 = vmatpush2.msra.mxu0 0.0
    %1140 = vmatprep.mubr.f32.mxu0 0.0
    %1141 = vmatmul.mubr.f32.gmra.mxu0 %v1074
    %v1142 = vpop.f32.mrf.mxu0
    %v1143 = vadd.f32 0.0, %v1142
    %v1144 = vpop.f32.mrf.mxu0
    %1145 = vdwg.mxu0
    %v1146 = vrot.slane %v238, 6
    %v1148 = vrot.slane %v243, 5
    %v1150 = vsel %vm351, %v1146, %v1148
    %v1151 = vpack.c.bf16 %v1072, %v1072
    %v1153 = vsel %vm62, %v1151, 0
    %1155 = vmatprep.subr.bf16.mxu0 0
    %1156 = vmatpush1.bf16.msra.mxu0 0
    %1157 = vmatprep.subr.bf16.mxu0 0
    %1158 = vmatpush1.bf16.msra.mxu0 0
    %1159 = vmatprep.subr.bf16.mxu0 0
    %1160 = vmatpush1.bf16.msra.mxu0 0
    %1161 = vmatprep.subr.bf16.mxu0 0
    %1162 = vmatpush1.bf16.msra.mxu0 0
    %1163 = vmatprep.subr.bf16.mxu0 0
    %1164 = vmatpush1.bf16.msra.mxu0 0
    %1165 = vmatprep.subr.bf16.mxu0 0
    %1166 = vmatpush1.bf16.msra.mxu0 0
    %1167 = vmatprep.subr.bf16.mxu0 0
    %1168 = vmatpush1.bf16.msra.mxu0 %v358
    %1169 = vmatprep.subr.bf16.mxu0 0
    %1170 = vmatpush1.bf16.msra.mxu0 %v356
    %1171 = vmatprep.subr.bf16.mxu0 0
    %1172 = vmatpush2.bf16.msra.mxu0 0
    %1173 = vmatprep.subr.bf16.mxu0 0
    %1174 = vmatpush2.bf16.msra.mxu0 0
    %1175 = vmatprep.subr.bf16.mxu0 0
    %1176 = vmatpush2.bf16.msra.mxu0 0
    %1177 = vmatprep.subr.bf16.mxu0 0
    %1178 = vmatpush2.bf16.msra.mxu0 0
    %1179 = vmatprep.subr.bf16.mxu0 0
    %1180 = vmatpush2.bf16.msra.mxu0 0
    %1181 = vmatprep.subr.bf16.mxu0 0
    %1182 = vmatpush2.bf16.msra.mxu0 0
    %1183 = vmatprep.subr.bf16.mxu0 0
    %1184 = vmatpush2.bf16.msra.mxu0 0
    %1185 = vmatprep.subr.bf16.mxu0 0
    %1186 = vmatpush2.bf16.msra.mxu0 0
    %1187 = vmatprep.mubr.bf16.mxu0 0
    %1188 = vmatmul.mubr.bf16.gmra.mxu0 %v1153
    %v1189 = vpop.f32.mrf.mxu0
    %v1190 = vadd.f32 0.0, %v1189
    %v1191 = vpop.f32.mrf.mxu0
    %v1192 = vpop.f32.mrf.mxu0
    %v1193 = vpop.f32.mrf.mxu0
    %1194 = vdwg.mxu0
    %v1195 = vadd.f32 %v1150, %v1190
    %v1196 = vtanh.pop %v1195
    %1197 = vset.pattern.permute.xlu0 6
    %1198 = vperm.xlu0 %1197, %v406
    %v1199 = vpop.permute.xlu0 %1198
    %vm1200 = vcmp.eq.s32.totalorder %v1199, 1
    %v1201 = vsel %vm1200, %v1196, 0.0
    %v1202 = vsel %vm1200, %v1196, %v1072
    %v1204 = vsel %vm62, %v1201, 0
    %1206 = vmatprep.subr.mxu0 0.0
    %1207 = vmatpush1.msra.mxu0 0.0
    %1208 = vmatprep.subr.mxu0 0.0
    %1209 = vmatpush1.msra.mxu0 0.0
    %1210 = vmatprep.subr.mxu0 0.0
    %1211 = vmatpush1.msra.mxu0 0.0
    %1212 = vmatprep.subr.mxu0 0.0
    %1213 = vmatpush1.msra.mxu0 0.0
    %1214 = vmatprep.subr.mxu0 0.0
    %1215 = vmatpush1.msra.mxu0 0.0
    %1216 = vmatprep.subr.mxu0 0.0
    %1217 = vmatpush1.msra.mxu0 0.0
    %1218 = vmatprep.subr.mxu0 0.0
    %1219 = vmatpush1.msra.mxu0 0.0
    %1220 = vmatprep.subr.mxu0 0.0
    %1221 = vmatpush1.msra.mxu0 0.0
    %1222 = vmatprep.subr.mxu0 0.0
    %1223 = vmatpush1.msra.mxu0 0.0
    %1224 = vmatprep.subr.mxu0 0.0
    %1225 = vmatpush1.msra.mxu0 0.0
    %1226 = vmatprep.subr.mxu0 0.0
    %1227 = vmatpush1.msra.mxu0 0.0
    %1228 = vmatprep.subr.mxu0 0.0
    %1229 = vmatpush1.msra.mxu0 0.0
    %1230 = vmatprep.subr.mxu0 0.0
    %1231 = vmatpush1.msra.mxu0 %v419
    %1232 = vmatprep.subr.mxu0 0.0
    %1233 = vmatpush1.msra.mxu0 %v417
    %1234 = vmatprep.subr.mxu0 0.0
    %1235 = vmatpush1.msra.mxu0 %v415
    %1236 = vmatprep.subr.mxu0 0.0
    %1237 = vmatpush1.msra.mxu0 %v413
    %1238 = vmatprep.subr.mxu0 0.0
    %1239 = vmatpush2.msra.mxu0 0.0
    %1240 = vmatprep.subr.mxu0 0.0
    %1241 = vmatpush2.msra.mxu0 0.0
    %1242 = vmatprep.subr.mxu0 0.0
    %1243 = vmatpush2.msra.mxu0 0.0
    %1244 = vmatprep.subr.mxu0 0.0
    %1245 = vmatpush2.msra.mxu0 0.0
    %1246 = vmatprep.subr.mxu0 0.0
    %1247 = vmatpush2.msra.mxu0 0.0
    %1248 = vmatprep.subr.mxu0 0.0
    %1249 = vmatpush2.msra.mxu0 0.0
    %1250 = vmatprep.subr.mxu0 0.0
    %1251 = vmatpush2.msra.mxu0 0.0
    %1252 = vmatprep.subr.mxu0 0.0
    %1253 = vmatpush2.msra.mxu0 0.0
    %1254 = vmatprep.subr.mxu0 0.0
    %1255 = vmatpush2.msra.mxu0 0.0
    %1256 = vmatprep.subr.mxu0 0.0
    %1257 = vmatpush2.msra.mxu0 0.0
    %1258 = vmatprep.subr.mxu0 0.0
    %1259 = vmatpush2.msra.mxu0 0.0
    %1260 = vmatprep.subr.mxu0 0.0
    %1261 = vmatpush2.msra.mxu0 0.0
    %1262 = vmatprep.subr.mxu0 0.0
    %1263 = vmatpush2.msra.mxu0 0.0
    %1264 = vmatprep.subr.mxu0 0.0
    %1265 = vmatpush2.msra.mxu0 0.0
    %1266 = vmatprep.subr.mxu0 0.0
    %1267 = vmatpush2.msra.mxu0 0.0
    %1268 = vmatprep.subr.mxu0 0.0
    %1269 = vmatpush2.msra.mxu0 0.0
    %1270 = vmatprep.mubr.f32.mxu0 0.0
    %1271 = vmatmul.mubr.f32.gmra.mxu0 %v1204
    %v1272 = vpop.f32.mrf.mxu0
    %v1273 = vadd.f32 0.0, %v1272
    %v1274 = vpop.f32.mrf.mxu0
    %1275 = vdwg.mxu0
    %v1276 = vrot.slane %v238, 7
    %v1278 = vrot.slane %v243, 6
    %v1280 = vsel %vm351, %v1276, %v1278
    %v1281 = vpack.c.bf16 %v1202, %v1202
    %v1283 = vsel %vm62, %v1281, 0
    %1285 = vmatprep.subr.bf16.mxu0 0
    %1286 = vmatpush1.bf16.msra.mxu0 0
    %1287 = vmatprep.subr.bf16.mxu0 0
    %1288 = vmatpush1.bf16.msra.mxu0 0
    %1289 = vmatprep.subr.bf16.mxu0 0
    %1290 = vmatpush1.bf16.msra.mxu0 0
    %1291 = vmatprep.subr.bf16.mxu0 0
    %1292 = vmatpush1.bf16.msra.mxu0 0
    %1293 = vmatprep.subr.bf16.mxu0 0
    %1294 = vmatpush1.bf16.msra.mxu0 0
    %1295 = vmatprep.subr.bf16.mxu0 0
    %1296 = vmatpush1.bf16.msra.mxu0 0
    %1297 = vmatprep.subr.bf16.mxu0 0
    %1298 = vmatpush1.bf16.msra.mxu0 %v358
    %1299 = vmatprep.subr.bf16.mxu0 0
    %1300 = vmatpush1.bf16.msra.mxu0 %v356
    %1301 = vmatprep.subr.bf16.mxu0 0
    %1302 = vmatpush2.bf16.msra.mxu0 0
    %1303 = vmatprep.subr.bf16.mxu0 0
    %1304 = vmatpush2.bf16.msra.mxu0 0
    %1305 = vmatprep.subr.bf16.mxu0 0
    %1306 = vmatpush2.bf16.msra.mxu0 0
    %1307 = vmatprep.subr.bf16.mxu0 0
    %1308 = vmatpush2.bf16.msra.mxu0 0
    %1309 = vmatprep.subr.bf16.mxu0 0
    %1310 = vmatpush2.bf16.msra.mxu0 0
    %1311 = vmatprep.subr.bf16.mxu0 0
    %1312 = vmatpush2.bf16.msra.mxu0 0
    %1313 = vmatprep.subr.bf16.mxu0 0
    %1314 = vmatpush2.bf16.msra.mxu0 0
    %1315 = vmatprep.subr.bf16.mxu0 0
    %1316 = vmatpush2.bf16.msra.mxu0 0
    %1317 = vmatprep.mubr.bf16.mxu0 0
    %1318 = vmatmul.mubr.bf16.gmra.mxu0 %v1283
    %v1319 = vpop.f32.mrf.mxu0
    %v1320 = vadd.f32 0.0, %v1319
    %v1321 = vpop.f32.mrf.mxu0
    %v1322 = vpop.f32.mrf.mxu0
    %v1323 = vpop.f32.mrf.mxu0
    %1324 = vdwg.mxu0
    %v1325 = vadd.f32 %v1280, %v1320
    %v1326 = vtanh.pop %v1325
    %1327 = vset.pattern.permute.xlu0 7
    %1328 = vperm.xlu0 %1327, %v406
    %v1329 = vpop.permute.xlu0 %1328
    %vm1330 = vcmp.eq.s32.totalorder %v1329, 1
    %v1331 = vsel %vm1330, %v1326, 0.0
    %v1333 = vsel %vm62, %v1331, 0
    %1335 = vmatprep.subr.mxu0 0.0
    %1336 = vmatpush1.msra.mxu0 0.0
    %1337 = vmatprep.subr.mxu0 0.0
    %1338 = vmatpush1.msra.mxu0 0.0
    %1339 = vmatprep.subr.mxu0 0.0
    %1340 = vmatpush1.msra.mxu0 0.0
    %1341 = vmatprep.subr.mxu0 0.0
    %1342 = vmatpush1.msra.mxu0 0.0
    %1343 = vmatprep.subr.mxu0 0.0
    %1344 = vmatpush1.msra.mxu0 0.0
    %1345 = vmatprep.subr.mxu0 0.0
    %1346 = vmatpush1.msra.mxu0 0.0
    %1347 = vmatprep.subr.mxu0 0.0
    %1348 = vmatpush1.msra.mxu0 0.0
    %1349 = vmatprep.subr.mxu0 0.0
    %1350 = vmatpush1.msra.mxu0 0.0
    %1351 = vmatprep.subr.mxu0 0.0
    %1352 = vmatpush1.msra.mxu0 0.0
    %1353 = vmatprep.subr.mxu0 0.0
    %1354 = vmatpush1.msra.mxu0 0.0
    %1355 = vmatprep.subr.mxu0 0.0
    %1356 = vmatpush1.msra.mxu0 0.0
    %1357 = vmatprep.subr.mxu0 0.0
    %1358 = vmatpush1.msra.mxu0 0.0
    %1359 = vmatprep.subr.mxu0 0.0
    %1360 = vmatpush1.msra.mxu0 %v419
    %1361 = vmatprep.subr.mxu0 0.0
    %1362 = vmatpush1.msra.mxu0 %v417
    %1363 = vmatprep.subr.mxu0 0.0
    %1364 = vmatpush1.msra.mxu0 %v415
    %1365 = vmatprep.subr.mxu0 0.0
    %1366 = vmatpush1.msra.mxu0 %v413
    %1367 = vmatprep.subr.mxu0 0.0
    %1368 = vmatpush2.msra.mxu0 0.0
    %1369 = vmatprep.subr.mxu0 0.0
    %1370 = vmatpush2.msra.mxu0 0.0
    %1371 = vmatprep.subr.mxu0 0.0
    %1372 = vmatpush2.msra.mxu0 0.0
    %1373 = vmatprep.subr.mxu0 0.0
    %1374 = vmatpush2.msra.mxu0 0.0
    %1375 = vmatprep.subr.mxu0 0.0
    %1376 = vmatpush2.msra.mxu0 0.0
    %1377 = vmatprep.subr.mxu0 0.0
    %1378 = vmatpush2.msra.mxu0 0.0
    %1379 = vmatprep.subr.mxu0 0.0
    %1380 = vmatpush2.msra.mxu0 0.0
    %1381 = vmatprep.subr.mxu0 0.0
    %1382 = vmatpush2.msra.mxu0 0.0
    %1383 = vmatprep.subr.mxu0 0.0
    %1384 = vmatpush2.msra.mxu0 0.0
    %1385 = vmatprep.subr.mxu0 0.0
    %1386 = vmatpush2.msra.mxu0 0.0
    %1387 = vmatprep.subr.mxu0 0.0
    %1388 = vmatpush2.msra.mxu0 0.0
    %1389 = vmatprep.subr.mxu0 0.0
    %1390 = vmatpush2.msra.mxu0 0.0
    %1391 = vmatprep.subr.mxu0 0.0
    %1392 = vmatpush2.msra.mxu0 0.0
    %1393 = vmatprep.subr.mxu0 0.0
    %1394 = vmatpush2.msra.mxu0 0.0
    %1395 = vmatprep.subr.mxu0 0.0
    %1396 = vmatpush2.msra.mxu0 0.0
    %1397 = vmatprep.subr.mxu0 0.0
    %1398 = vmatpush2.msra.mxu0 0.0
    %1399 = vmatprep.mubr.f32.mxu0 0.0
    %1400 = vmatmul.mubr.f32.gmra.mxu0 %v1333
    %v1401 = vpop.f32.mrf.mxu0
    %v1402 = vadd.f32 0.0, %v1401
    %v1403 = vpop.f32.mrf.mxu0
    %1404 = vdwg.mxu0
    %v1406 = vrot.slane %v623, 7
    %v1409 = vrot.slane %v753, 6
    %v1412 = vrot.slane %v883, 5
    %v1415 = vrot.slane %v1013, 4
    %v1418 = vrot.slane %v1143, 3
    %v1421 = vrot.slane %v1273, 2
    %v1424 = vrot.slane %v1402, 1
    %v1426 = vsel %vm351, %v494, %v1406
    %vm1427 = vcmask 1041408
    %v1428 = vsel %vm1427, %v1426, %v1409
    %vm1429 = vcmask 1042432
    %v1430 = vsel %vm1429, %v1428, %v1412
    %vm1431 = vcmask 1043456
    %v1432 = vsel %vm1431, %v1430, %v1415
    %vm1433 = vcmask 1044480
    %v1434 = vsel %vm1433, %v1432, %v1418
    %vm1435 = vcmask 1045504
    %v1436 = vsel %vm1435, %v1434, %v1421
    %vm1437 = vcmask 1046528
    %v1438 = vsel %vm1437, %v1436, %v1424
    %v1439 = vadd.f32 %v1438, %v333
    %1440 = vxpose.xlu0.b32.start [1/16] %v1439, 128
    %1441 = vxpose.xlu0.b32.cont [2/16] 0.0, 128
    %1442 = vxpose.xlu0.b32.cont [3/16] 0.0, 128
    %1443 = vxpose.xlu0.b32.cont [4/16] 0.0, 128
    %1444 = vxpose.xlu0.b32.cont [5/16] 0.0, 128
    %1445 = vxpose.xlu0.b32.cont [6/16] 0.0, 128
    %1446 = vxpose.xlu0.b32.cont [7/16] 0.0, 128
    %1447 = vxpose.xlu0.b32.cont [8/16] 0.0, 128
    %1448 = vxpose.xlu0.b32.cont [9/16] 0.0, 128
    %1449 = vxpose.xlu0.b32.cont [10/16] 0.0, 128
    %1450 = vxpose.xlu0.b32.cont [11/16] 0.0, 128
    %1451 = vxpose.xlu0.b32.cont [12/16] 0.0, 128
    %1452 = vxpose.xlu0.b32.cont [13/16] 0.0, 128
    %1453 = vxpose.xlu0.b32.cont [14/16] 0.0, 128
    %1454 = vxpose.xlu0.b32.cont [15/16] 0.0, 128
    %1455 = vxpose.xlu0.b32.end [16/16] 0.0, 128
    %v1456 = vpop.trf.xlu0
    %v1457 = vpop.trf.xlu0
    %v1458 = vpop.trf.xlu0
    %v1459 = vpop.trf.xlu0
    %v1460 = vpop.trf.xlu0
    %v1461 = vpop.trf.xlu0
    %v1462 = vpop.trf.xlu0
    %v1463 = vpop.trf.xlu0
    %v1464 = vpop.trf.xlu0
    %v1465 = vpop.trf.xlu0
    %v1466 = vpop.trf.xlu0
    %v1467 = vpop.trf.xlu0
    %v1468 = vpop.trf.xlu0
    %v1469 = vpop.trf.xlu0
    %v1470 = vpop.trf.xlu0
    %v1471 = vpop.trf.xlu0
    %v1473 = vrot.slane %v494, 1
    %v1475 = vrot.slane %v753, 7
    %v1477 = vrot.slane %v883, 6
    %v1479 = vrot.slane %v1013, 5
    %v1481 = vrot.slane %v1143, 4
    %v1483 = vrot.slane %v1273, 3
    %v1485 = vrot.slane %v1402, 2
    %v1487 = vsel %vm351, %v1473, %v623
    %v1488 = vsel %vm1427, %v1487, %v1475
    %v1489 = vsel %vm1429, %v1488, %v1477
    %v1490 = vsel %vm1431, %v1489, %v1479
    %v1491 = vsel %vm1433, %v1490, %v1481
    %v1492 = vsel %vm1435, %v1491, %v1483
    %v1493 = vsel %vm1437, %v1492, %v1485
    %v1494 = vadd.f32 %v1493, %v338
    %1495 = vxpose.xlu0.b32.start [1/16] %v1494, 128
    %1496 = vxpose.xlu0.b32.cont [2/16] 0.0, 128
    %1497 = vxpose.xlu0.b32.cont [3/16] 0.0, 128
    %1498 = vxpose.xlu0.b32.cont [4/16] 0.0, 128
    %1499 = vxpose.xlu0.b32.cont [5/16] 0.0, 128
    %1500 = vxpose.xlu0.b32.cont [6/16] 0.0, 128
    %1501 = vxpose.xlu0.b32.cont [7/16] 0.0, 128
    %1502 = vxpose.xlu0.b32.cont [8/16] 0.0, 128
    %1503 = vxpose.xlu0.b32.cont [9/16] 0.0, 128
    %1504 = vxpose.xlu0.b32.cont [10/16] 0.0, 128
    %1505 = vxpose.xlu0.b32.cont [11/16] 0.0, 128
    %1506 = vxpose.xlu0.b32.cont [12/16] 0.0, 128
    %1507 = vxpose.xlu0.b32.cont [13/16] 0.0, 128
    %1508 = vxpose.xlu0.b32.cont [14/16] 0.0, 128
    %1509 = vxpose.xlu0.b32.cont [15/16] 0.0, 128
    %1510 = vxpose.xlu0.b32.end [16/16] 0.0, 128
    %v1511 = vpop.trf.xlu0
    %v1512 = vpop.trf.xlu0
    %v1513 = vpop.trf.xlu0
    %v1514 = vpop.trf.xlu0
    %v1515 = vpop.trf.xlu0
    %v1516 = vpop.trf.xlu0
    %v1517 = vpop.trf.xlu0
    %v1518 = vpop.trf.xlu0
    %v1519 = vpop.trf.xlu0
    %v1520 = vpop.trf.xlu0
    %v1521 = vpop.trf.xlu0
    %v1522 = vpop.trf.xlu0
    %v1523 = vpop.trf.xlu0
    %v1524 = vpop.trf.xlu0
    %v1525 = vpop.trf.xlu0
    %v1526 = vpop.trf.xlu0
    %vm1527 = vcmask 64512
    %1528 = vst.msk [vmem:[#allocation7] sm:$0xff] %vm1527, %v1456
    %1529 = vst.msk [vmem:[#allocation7 + $0x8] sm:$0xff] %vm1527, %v1511
    // Predicated region
    $region26: #{sub_word_classifier_forward.1} parent=1 // pred_check
      _
    $region27: #{sub_word_classifier_forward.1} parent=1 // pred_check_branch
      %1531 = sbr.rel (0) target = $region29
    $region28: #{sub_word_classifier_forward.1} parent=1 // pred_region
      %s1533 = ssub.s32 256, 256
      %1534 = vsyncadd [#allocation4], %s1533
      %s1535 = sshll.u32 [#allocation7], 4
      %s1536 = int_to_ptr.vmem [resolvable:$true] %s1535
      %1541 = dma.vmem_to_hbm [thread:$0]  %s1536, 256, %s4, [#allocation4], 128, 128, 8
    $region29: #{sub_word_classifier_forward.1} parent=1 // pred_fallthru
      _
    // Predicated region
    $region30: #{sub_word_classifier_forward.1} parent=1 // pred_check
      _
    $region31: #{sub_word_classifier_forward.1} parent=1 // pred_check_branch
      %1543 = sbr.rel (0) target = $region33
    $region32: #{sub_word_classifier_forward.1} parent=1 // pred_region
      %1544 = dma.done [#allocation4], 256
    $region33: #{sub_word_classifier_forward.1} parent=1 // pred_fallthru
      _
    %1545 = vsyncpa [#allocation3], 1
    %1546 = vsyncpa [#allocation6], 1
    %1547 = vsyncpa [#allocation4], 1

</llo_original>
